<compile_context>
chip_gen: v5e
topology: v5e:2x2
jax: 0.10.0
libtpu: 0.0.40
codegen_flags: <defaults>
</compile_context>

<pallas_src>
import jax
import jax.numpy as jnp
from jax import lax
from jax.experimental import pallas as pl
from jax.experimental.pallas import tpu as pltpu


# --------------------------------------------------------------------------
# Pallas kernel: fused 3x3 conv + bias + ReLU on one (channel-tile, slab)
# --------------------------------------------------------------------------
def repblock_kernel(x_ref, w_ref, b_ref, o_ref, col_ref):
    # x_ref  : (1, TH+2, W+2, Cin)  bf16 zero-padded row slab (includes halo)
    # w_ref  : (9*Cin, TC)          bf16 reparametrized 3x3 weights
    # b_ref  : (1, TC)              f32 fused bias
    # o_ref  : (1, TH, W, TC)       output tile
    # col_ref: (TH, W, 9*Cin)       bf16 VMEM scratch (im2col slab)
    TH = o_ref.shape[1]
    W = o_ref.shape[2]
    TC = o_ref.shape[3]
    Cin = x_ref.shape[3]

    # im2col: gather the 9 shifted (TH, W, Cin) windows into one slab so the
    # MXU sees a single fat K = 9*Cin contraction instead of 9 skinny ones.
    for dy in range(3):
        for dx in range(3):
            j = dy * 3 + dx
            col_ref[:, :, j * Cin:(j + 1) * Cin] = (
                x_ref[0, dy:dy + TH, dx:dx + W, :]
            )

    patches = col_ref[...].reshape(TH * W, 9 * Cin)        # contiguous reshape
    acc = jnp.dot(patches, w_ref[...], preferred_element_type=jnp.float32)
    out = jnp.maximum(acc + b_ref[...], 0.0)
    o_ref[...] = out.reshape(1, TH, W, TC).astype(o_ref.dtype)


# --------------------------------------------------------------------------
# Glue: BN folding + RepVGG reparameterization (exact, pure JAX, done once)
# --------------------------------------------------------------------------
def fold_bn(gamma, beta, mean, var, eps=1e-5):
    scale = gamma / jnp.sqrt(var + eps)
    shift = beta - scale * mean
    return scale, shift


def reparametrize(w3_raw, w1_raw, bn3, bn1, bnid=None):
    """Fold the 1x1 and identity branches into a single 3x3 weight + bias."""
    s3, t3 = fold_bn(*bn3)
    s1, t1 = fold_bn(*bn1)
    w = w3_raw * s3                               # (3,3,Cin,Cout) * (Cout,)
    w = w.at[1, 1].add((w1_raw * s1)[0, 0])       # 1x1 branch -> centre tap
    b = t3 + t1
    if bnid is not None:
        cin, cout = w3_raw.shape[2], w3_raw.shape[3]
        if cin != cout:
            raise ValueError("identity branch requires inplanes == planes")
        sid, tid = fold_bn(*bnid)
        diag = jnp.arange(cin)
        w = w.at[1, 1, diag, diag].add(sid)       # identity BN -> diagonal
        b = b + tid
    return w, b


def _pick_tile_h(H, target):
    th = min(H, target)
    while H % th:
        th -= 1
    return th


def repblock_forward(x, w_rep, b_rep, *, tile_h=8):
    """x: (N, H, W, Cin) float32; w_rep: (3,3,Cin,Cout); b_rep: (Cout,)."""
    N, H, W, Cin = x.shape
    Cout = w_rep.shape[-1]

    TH = _pick_tile_h(H, tile_h)
    nH = H // TH
    nS = N * nH
    TC = 128 if Cout % 128 == 0 else Cout     # lane-dense Cout tiles if possible
    nC = Cout // TC
    # TODO(synk): when Cout < 128 the output store is lane-masked; padding Cout
    # to 128 in glue would make it lane-dense at the cost of extra HBM traffic.

    # bf16 activations/weights; accumulation stays f32 on the MXU.
    x_bf = x.astype(jnp.bfloat16)
    # zero-pad H/W by 1 and build overlapping row slabs carrying the 1-row halo.
    # TODO(synk): this glue round-trip could be removed with an in-kernel manual
    # halo DMA (memory_space=pl.ANY); kept in glue for robustness.
    x_pad = jnp.pad(x_bf, ((0, 0), (1, 1), (1, 1), (0, 0)))
    slabs = jnp.stack(
        [x_pad[:, t * TH: t * TH + TH + 2] for t in range(nH)], axis=1
    ).reshape(nS, TH + 2, W + 2, Cin)

    w2d = w_rep.reshape(9 * Cin, Cout).astype(jnp.bfloat16)
    b2d = b_rep.reshape(1, Cout).astype(jnp.float32)

    # Grid: channel tile OUTERMOST so the weight/bias tiles are fetched once
    # per channel tile and stay resident while the slab axis sweeps.
    grid_spec = pltpu.PrefetchScalarGridSpec(
        num_scalar_prefetch=0,
        grid=(nC, nS),
        in_specs=[
            pl.BlockSpec((1, TH + 2, W + 2, Cin), lambda c, s: (s, 0, 0, 0)),
            pl.BlockSpec((9 * Cin, TC), lambda c, s: (0, c)),
            pl.BlockSpec((1, TC), lambda c, s: (0, c)),
        ],
        out_specs=pl.BlockSpec((1, TH, W, TC), lambda c, s: (s, 0, 0, c)),
        scratch_shapes=[pltpu.VMEM((TH, W, 9 * Cin), jnp.bfloat16)],
    )

    out_slabs = pl.pallas_call(
        repblock_kernel,
        out_shape=jax.ShapeDtypeStruct((nS, TH, W, Cout), x.dtype),
        grid_spec=grid_spec,
        compiler_params=pltpu.CompilerParams(
            dimension_semantics=("parallel", "parallel"),
            vmem_limit_bytes=32 * 1024 * 1024,
        ),
    )(slabs, w2d, b2d)

    # (N*nH, TH, W, Cout) -> (N, H, W, Cout); contiguous reshape, metadata-only.
    return out_slabs.reshape(N, H, W, Cout)


# --------------------------------------------------------------------------
# Parameter construction + pure-JAX references for verification
# --------------------------------------------------------------------------
def make_params(key, inplanes, planes):
    ks = jax.random.split(key, 12)
    w3_raw = jax.random.normal(ks[0], (3, 3, inplanes, planes), jnp.float32) * 0.1
    w1_raw = jax.random.normal(ks[1], (1, 1, inplanes, planes), jnp.float32) * 0.1

    def bn(k0, k1, k2, k3, n):
        g = jax.random.uniform(k0, (n,), jnp.float32, 0.5, 1.5)
        b = jax.random.normal(k1, (n,), jnp.float32) * 0.1
        m = jax.random.normal(k2, (n,), jnp.float32) * 0.1
        v = jax.random.uniform(k3, (n,), jnp.float32, 0.5, 1.5)
        return g, b, m, v

    bn3 = bn(ks[2], ks[3], ks[4], ks[5], planes)
    bn1 = bn(ks[6], ks[7], ks[8], ks[9], planes)
    gi = jax.random.uniform(ks[10], (planes,), jnp.float32, 0.5, 1.5)
    bei = jax.random.normal(ks[11], (planes,), jnp.float32) * 0.1
    mi = jnp.linspace(-0.1, 0.1, planes, dtype=jnp.float32)
    vi = jnp.linspace(0.8, 1.2, planes, dtype=jnp.float32)
    bnid = (gi, bei, mi, vi)
    return w3_raw, w1_raw, bn3, bn1, bnid


_DN = ("NHWC", "HWIO", "NHWC")


def reference_three_branch(x, w3_raw, w1_raw, bn3, bn1, bnid):
    s3, t3 = fold_bn(*bn3)
    s1, t1 = fold_bn(*bn1)
    sid, tid = fold_bn(*bnid)
    y3 = lax.conv_general_dilated(x, w3_raw, (1, 1), "SAME", dimension_numbers=_DN,
                                  precision=lax.Precision.HIGHEST) * s3 + t3
    y1 = lax.conv_general_dilated(x, w1_raw, (1, 1), "SAME", dimension_numbers=_DN,
                                  precision=lax.Precision.HIGHEST) * s1 + t1
    yid = x * sid + tid
    return jnp.maximum(y3 + y1 + yid, 0.0)


def reference_rep_conv(x, w_rep, b_rep):
    y = lax.conv_general_dilated(x, w_rep, (1, 1), "SAME", dimension_numbers=_DN,
                                 precision=lax.Precision.HIGHEST)
    return jnp.maximum(y + b_rep, 0.0)


if __name__ == "__main__":
    N, C, H, W = 2, 4, 16, 16   # inplanes == planes -> identity branch active
    key = jax.random.PRNGKey(0)
    kx, kp = jax.random.split(key)
    x_nchw = jax.random.normal(kx, (N, C, H, W), jnp.float32)   # PyTorch layout
    x = jnp.transpose(x_nchw, (0, 2, 3, 1))                     # -> NHWC

    w3_raw, w1_raw, bn3, bn1, bnid = make_params(kp, C, C)
    w_rep, b_rep = reparametrize(w3_raw, w1_raw, bn3, bn1, bnid)

    # Sanity: the reparameterization is exact (pure f32 JAX, no kernel).
    ref3 = reference_three_branch(x, w3_raw, w1_raw, bn3, bn1, bnid)
    refr = reference_rep_conv(x, w_rep, b_rep)
    assert jnp.allclose(refr, ref3, atol=1e-4, rtol=1e-4), "reparam mismatch"

    out = jax.block_until_ready(repblock_forward(x, w_rep, b_rep))
    assert out.shape == (N, H, W, C)

    # Kernel check against a reference driven by the same bf16-quantized
    # activations/weights (kernel does bf16 x bf16 with f32 accumulation).
    x_q = x.astype(jnp.bfloat16).astype(jnp.float32)
    w_q = w_rep.astype(jnp.bfloat16).astype(jnp.float32)
    ref_q = reference_rep_conv(x_q, w_q, b_rep)
    assert jnp.allclose(out, ref_q, atol=1e-2, rtol=1e-2), "mismatch vs JAX reference"

    print("KERNEL_OK")
</pallas_src>

<mosaic_0001>
module attributes {stable_mosaic.version = 11 : i64} {
  func.func @repblock_kernel(%arg0: i32, %arg1: i32, %arg2: memref<1x10x18x4xbf16, #tpu.memory_space<vmem>>, %arg3: memref<36x4xbf16, #tpu.memory_space<vmem>>, %arg4: memref<1x4xf32, #tpu.memory_space<vmem>>, %arg5: memref<1x8x16x4xf32, #tpu.memory_space<vmem>>, %arg6: memref<8x16x36xbf16, #tpu.memory_space<vmem>>) attributes {dimension_semantics = [#tpu.dimension_semantics<parallel>, #tpu.dimension_semantics<parallel>], iteration_bounds = array<i64: 1, 4>, scalar_prefetch = 0 : i64, scratch_operands = 1 : i64, tpu.core_type = #tpu.core_type<tc>, window_params = [{transform_indices = @transform_0, window_bounds = array<i64: 1, 10, 18, 4>}, {transform_indices = @transform_1, window_bounds = array<i64: 36, 4>}, {transform_indices = @transform_2, window_bounds = array<i64: 1, 4>}, {transform_indices = @transform_3, window_bounds = array<i64: 1, 8, 16, 4>}]} {
    %c0 = arith.constant 0 : index
    %c0_0 = arith.constant 0 : index
    %c0_1 = arith.constant 0 : index
    %c0_2 = arith.constant 0 : index
    %0 = vector.load %arg2[%c0, %c0_0, %c0_1, %c0_2] : memref<1x10x18x4xbf16, #tpu.memory_space<vmem>>, vector<1x8x16x4xbf16>
    %1 = vector.shape_cast %0 : vector<1x8x16x4xbf16> to vector<8x16x4xbf16>
    %c0_3 = arith.constant 0 : index
    %c0_4 = arith.constant 0 : index
    %c0_5 = arith.constant 0 : index
    %2 = vector.load %arg6[%c0_3, %c0_4, %c0_5] : memref<8x16x36xbf16, #tpu.memory_space<vmem>>, vector<8x16x4xbf16>
    tpu.vector_store %arg6[%c0_3, %c0_4, %c0_5], %1 {strides = array<i32>} : memref<8x16x36xbf16, #tpu.memory_space<vmem>>, vector<8x16x4xbf16>,
    %c0_6 = arith.constant 0 : index
    %c0_7 = arith.constant 0 : index
    %c1 = arith.constant 1 : index
    %c0_8 = arith.constant 0 : index
    %3 = vector.load %arg2[%c0_6, %c0_7, %c1, %c0_8] : memref<1x10x18x4xbf16, #tpu.memory_space<vmem>>, vector<1x8x16x4xbf16>
    %4 = vector.shape_cast %3 : vector<1x8x16x4xbf16> to vector<8x16x4xbf16>
    %c0_9 = arith.constant 0 : index
    %c0_10 = arith.constant 0 : index
    %c4 = arith.constant 4 : index
    %5 = vector.load %arg6[%c0_9, %c0_10, %c4] : memref<8x16x36xbf16, #tpu.memory_space<vmem>>, vector<8x16x4xbf16>
    tpu.vector_store %arg6[%c0_9, %c0_10, %c4], %4 {strides = array<i32>} : memref<8x16x36xbf16, #tpu.memory_space<vmem>>, vector<8x16x4xbf16>,
    %c0_11 = arith.constant 0 : index
    %c0_12 = arith.constant 0 : index
    %c2 = arith.constant 2 : index
    %c0_13 = arith.constant 0 : index
    %6 = vector.load %arg2[%c0_11, %c0_12, %c2, %c0_13] : memref<1x10x18x4xbf16, #tpu.memory_space<vmem>>, vector<1x8x16x4xbf16>
    %7 = vector.shape_cast %6 : vector<1x8x16x4xbf16> to vector<8x16x4xbf16>
    %c0_14 = arith.constant 0 : index
    %c0_15 = arith.constant 0 : index
    %c8 = arith.constant 8 : index
    %8 = vector.load %arg6[%c0_14, %c0_15, %c8] : memref<8x16x36xbf16, #tpu.memory_space<vmem>>, vector<8x16x4xbf16>
    tpu.vector_store %arg6[%c0_14, %c0_15, %c8], %7 {strides = array<i32>} : memref<8x16x36xbf16, #tpu.memory_space<vmem>>, vector<8x16x4xbf16>,
    %c0_16 = arith.constant 0 : index
    %c1_17 = arith.constant 1 : index
    %c0_18 = arith.constant 0 : index
    %c0_19 = arith.constant 0 : index
    %9 = vector.load %arg2[%c0_16, %c1_17, %c0_18, %c0_19] : memref<1x10x18x4xbf16, #tpu.memory_space<vmem>>, vector<1x8x16x4xbf16>
    %10 = vector.shape_cast %9 : vector<1x8x16x4xbf16> to vector<8x16x4xbf16>
    %c0_20 = arith.constant 0 : index
    %c0_21 = arith.constant 0 : index
    %c12 = arith.constant 12 : index
    %11 = vector.load %arg6[%c0_20, %c0_21, %c12] : memref<8x16x36xbf16, #tpu.memory_space<vmem>>, vector<8x16x4xbf16>
    tpu.vector_store %arg6[%c0_20, %c0_21, %c12], %10 {strides = array<i32>} : memref<8x16x36xbf16, #tpu.memory_space<vmem>>, vector<8x16x4xbf16>,
    %c0_22 = arith.constant 0 : index
    %c1_23 = arith.constant 1 : index
    %c1_24 = arith.constant 1 : index
    %c0_25 = arith.constant 0 : index
    %12 = vector.load %arg2[%c0_22, %c1_23, %c1_24, %c0_25] : memref<1x10x18x4xbf16, #tpu.memory_space<vmem>>, vector<1x8x16x4xbf16>
    %13 = vector.shape_cast %12 : vector<1x8x16x4xbf16> to vector<8x16x4xbf16>
    %c0_26 = arith.constant 0 : index
    %c0_27 = arith.constant 0 : index
    %c16 = arith.constant 16 : index
    %14 = vector.load %arg6[%c0_26, %c0_27, %c16] : memref<8x16x36xbf16, #tpu.memory_space<vmem>>, vector<8x16x4xbf16>
    tpu.vector_store %arg6[%c0_26, %c0_27, %c16], %13 {strides = array<i32>} : memref<8x16x36xbf16, #tpu.memory_space<vmem>>, vector<8x16x4xbf16>,
    %c0_28 = arith.constant 0 : index
    %c1_29 = arith.constant 1 : index
    %c2_30 = arith.constant 2 : index
    %c0_31 = arith.constant 0 : index
    %15 = vector.load %arg2[%c0_28, %c1_29, %c2_30, %c0_31] : memref<1x10x18x4xbf16, #tpu.memory_space<vmem>>, vector<1x8x16x4xbf16>
    %16 = vector.shape_cast %15 : vector<1x8x16x4xbf16> to vector<8x16x4xbf16>
    %c0_32 = arith.constant 0 : index
    %c0_33 = arith.constant 0 : index
    %c20 = arith.constant 20 : index
    %17 = vector.load %arg6[%c0_32, %c0_33, %c20] : memref<8x16x36xbf16, #tpu.memory_space<vmem>>, vector<8x16x4xbf16>
    tpu.vector_store %arg6[%c0_32, %c0_33, %c20], %16 {strides = array<i32>} : memref<8x16x36xbf16, #tpu.memory_space<vmem>>, vector<8x16x4xbf16>,
    %c0_34 = arith.constant 0 : index
    %c2_35 = arith.constant 2 : index
    %c0_36 = arith.constant 0 : index
    %c0_37 = arith.constant 0 : index
    %18 = vector.load %arg2[%c0_34, %c2_35, %c0_36, %c0_37] : memref<1x10x18x4xbf16, #tpu.memory_space<vmem>>, vector<1x8x16x4xbf16>
    %19 = vector.shape_cast %18 : vector<1x8x16x4xbf16> to vector<8x16x4xbf16>
    %c0_38 = arith.constant 0 : index
    %c0_39 = arith.constant 0 : index
    %c24 = arith.constant 24 : index
    %20 = vector.load %arg6[%c0_38, %c0_39, %c24] : memref<8x16x36xbf16, #tpu.memory_space<vmem>>, vector<8x16x4xbf16>
    tpu.vector_store %arg6[%c0_38, %c0_39, %c24], %19 {strides = array<i32>} : memref<8x16x36xbf16, #tpu.memory_space<vmem>>, vector<8x16x4xbf16>,
    %c0_40 = arith.constant 0 : index
    %c2_41 = arith.constant 2 : index
    %c1_42 = arith.constant 1 : index
    %c0_43 = arith.constant 0 : index
    %21 = vector.load %arg2[%c0_40, %c2_41, %c1_42, %c0_43] : memref<1x10x18x4xbf16, #tpu.memory_space<vmem>>, vector<1x8x16x4xbf16>
    %22 = vector.shape_cast %21 : vector<1x8x16x4xbf16> to vector<8x16x4xbf16>
    %c0_44 = arith.constant 0 : index
    %c0_45 = arith.constant 0 : index
    %c28 = arith.constant 28 : index
    %23 = vector.load %arg6[%c0_44, %c0_45, %c28] : memref<8x16x36xbf16, #tpu.memory_space<vmem>>, vector<8x16x4xbf16>
    tpu.vector_store %arg6[%c0_44, %c0_45, %c28], %22 {strides = array<i32>} : memref<8x16x36xbf16, #tpu.memory_space<vmem>>, vector<8x16x4xbf16>,
    %c0_46 = arith.constant 0 : index
    %c2_47 = arith.constant 2 : index
    %c2_48 = arith.constant 2 : index
    %c0_49 = arith.constant 0 : index
    %24 = vector.load %arg2[%c0_46, %c2_47, %c2_48, %c0_49] : memref<1x10x18x4xbf16, #tpu.memory_space<vmem>>, vector<1x8x16x4xbf16>
    %25 = vector.shape_cast %24 : vector<1x8x16x4xbf16> to vector<8x16x4xbf16>
    %c0_50 = arith.constant 0 : index
    %c0_51 = arith.constant 0 : index
    %c32 = arith.constant 32 : index
    %26 = vector.load %arg6[%c0_50, %c0_51, %c32] : memref<8x16x36xbf16, #tpu.memory_space<vmem>>, vector<8x16x4xbf16>
    tpu.vector_store %arg6[%c0_50, %c0_51, %c32], %25 {strides = array<i32>} : memref<8x16x36xbf16, #tpu.memory_space<vmem>>, vector<8x16x4xbf16>,
    %c0_52 = arith.constant 0 : index
    %c0_53 = arith.constant 0 : index
    %c0_54 = arith.constant 0 : index
    %27 = vector.load %arg6[%c0_52, %c0_53, %c0_54] : memref<8x16x36xbf16, #tpu.memory_space<vmem>>, vector<8x16x36xbf16>
    %28 = vector.shape_cast %27 : vector<8x16x36xbf16> to vector<128x36xbf16>
    %c0_55 = arith.constant 0 : index
    %c0_56 = arith.constant 0 : index
    %29 = vector.load %arg3[%c0_55, %c0_56] : memref<36x4xbf16, #tpu.memory_space<vmem>>, vector<36x4xbf16>
    %cst = arith.constant dense<0.000000e+00> : vector<128x4xf32>
    %30 = tpu.matmul %28, %29, %cst {dimension_numbers = #tpu.dot_dimension_numbers<[1], [0], [0], [1], [0, 0, 1, 1], [], []>} : vector<128x36xbf16>, vector<36x4xbf16>, vector<128x4xf32> -> vector<128x4xf32>
    %c0_57 = arith.constant 0 : index
    %c0_58 = arith.constant 0 : index
    %31 = vector.load %arg4[%c0_57, %c0_58] : memref<1x4xf32, #tpu.memory_space<vmem>>, vector<1x4xf32>
    %32 = vector.broadcast %31 : vector<1x4xf32> to vector<128x4xf32>
    %33 = arith.addf %30, %32 : vector<128x4xf32>
    %cst_59 = arith.constant 0.000000e+00 : f32
    %34 = vector.broadcast %cst_59 : f32 to vector<128x4xf32>
    %35 = arith.maximumf %33, %34 : vector<128x4xf32>
    %36 = vector.shape_cast %35 : vector<128x4xf32> to vector<1x8x16x4xf32>
    %c0_60 = arith.constant 0 : index
    %c0_61 = arith.constant 0 : index
    %c0_62 = arith.constant 0 : index
    %c0_63 = arith.constant 0 : index
    %37 = vector.load %arg5[%c0_60, %c0_61, %c0_62, %c0_63] : memref<1x8x16x4xf32, #tpu.memory_space<vmem>>, vector<1x8x16x4xf32>
    tpu.vector_store %arg5[%c0_60, %c0_61, %c0_62, %c0_63], %36 {strides = array<i32>} : memref<1x8x16x4xf32, #tpu.memory_space<vmem>>, vector<1x8x16x4xf32>,
    return
  }
  func.func @transform_0(%arg0: i32, %arg1: i32) -> (i32, i32, i32, i32) {
    %c0_i32 = arith.constant 0 : i32
    %c0_i32_0 = arith.constant 0 : i32
    %c0_i32_1 = arith.constant 0 : i32
    %c0_i32_2 = arith.constant 0 : i32
    return %arg1, %c0_i32, %c0_i32_0, %c0_i32_1 : i32, i32, i32, i32
  }
  func.func @transform_1(%arg0: i32, %arg1: i32) -> (i32, i32) {
    %c0_i32 = arith.constant 0 : i32
    %c0_i32_0 = arith.constant 0 : i32
    return %c0_i32, %arg0 : i32, i32
  }
  func.func @transform_2(%arg0: i32, %arg1: i32) -> (i32, i32) {
    %c0_i32 = arith.constant 0 : i32
    %c0_i32_0 = arith.constant 0 : i32
    return %c0_i32, %arg0 : i32, i32
  }
  func.func @transform_3(%arg0: i32, %arg1: i32) -> (i32, i32, i32, i32) {
    %c0_i32 = arith.constant 0 : i32
    %c0_i32_0 = arith.constant 0 : i32
    %c0_i32_1 = arith.constant 0 : i32
    return %arg1, %c0_i32, %c0_i32_0, %arg0 : i32, i32, i32, i32
  }
}

</mosaic_0001>

<llo_original>
// kernel: tpu_custom_call.1
$region0: #{tpu_custom_call.1}
  #allocation0 [shape = 'u32[]', space=smem, size = 0x4, offset = 0x4, fixed_abs, tag = 'smem constant byte address 0x4 - core index']
  #allocation1 [shape = 'u32[72,128]{1,0:T(1,128)}', space=vmem, size = 0x9000, scoped, tag = 'internal scratch']
  #allocation2 [shape = 'bf16[8,16,36]{2,1,0:T(8,128)(2,1)}', space=vmem, size = 0x8000, scoped, tag = 'scratch operand']
  %s0 = inlined_call_operand.vmem [shape: bf16[4,10,18,4], index: 0, kind: input, shape index: {}]
  %s1 = inlined_call_operand.vmem [shape: bf16[36,4], index: 1, kind: input, shape index: {}]
  %s2 = inlined_call_operand.vmem [shape: f32[1,4], index: 2, kind: input, shape index: {}]
  %s3 = inlined_call_operand.vmem [shape: f32[4,8,16,4], index: 3, kind: output, shape index: {}]
  %s4 = sld [smem:[#allocation0]]
  $region45: #{tpu_custom_call.1} parent=0
    _
  %s6 = ssub.s32 1, %s4
  %s7 = scalar_select 0, %s6, %s4
  loop: start=0, step=1, limit=6
  $region2: #{tpu_custom_call.1} parent=0 // loop_pre_header
    _
  $region3: #{tpu_custom_call.1} parent=0 // loop_header
    %s9 = sphi 0, %s13
    %p10 = scmp.ge.s32.totalorder %s9, 6
    %s16 = sphi 0, %s28
    %s17 = sphi 0, %s24
    %s18 = sphi 0, %s16
    %s19 = sphi 0, %s17
    %s20 = sphi 0, %s18
    %s21 = sphi 0, %s19
    %s31 = sphi 0, %s33
    %s34 = sphi 0, %s31
    %s35 = sphi 0, %s34
    %s51 = sphi 0, %s35
    %s57 = sphi 0, %s59
    %s60 = sphi 0, %s57
    %s61 = sphi 0, %s60
    %s77 = sphi 0, %s61
    %s83 = sphi 0, %s85
    %s86 = sphi 0, %s83
    %s87 = sphi 0, %s86
    %s103 = sphi 0, %s87
    %s111 = sphi 0, %s113
    %s114 = sphi 0, %s111
    %s115 = sphi 0, %s114
    %s131 = sphi 0, %s115
  $region4: #{tpu_custom_call.1} parent=0 // loop_header_branch
    %12 = sbr.rel (%p10) target = $region8
  $region5: #{tpu_custom_call.1} parent=0 // loop_body
    %s14 = ssub.s32 %s9, 1
    %s15 = ssub.s32 %s9, 2
    %s22 = sadd.s32 1, %s17
    %p23 = scmp.ge.s32.totalorder %s22, 4
    %s24 = scalar_select %p23, 0, %s22
    %s25 = sadd.s32 1, %s16
    %s26 = scalar_select %p23, %s25, %s16
    %p27 = scmp.ge.s32.totalorder %s26, 1
    %s28 = scalar_select %p27, 0, %s26
    %s29 = ssub.s32 %s17, %s24
    %p30 = scmp.eq.s32.totalorder %s29, 0
    %s32 = sadd.s32 %s31, 1
    %s33 = scalar_select %p30, %s31, %s32
    %p36 = pneg %p30
    %p37 = scmp.eq.s32.totalorder %s9, 3
    %p38 = por %p36, %p37
    %p39 = scmp.ne.s32.totalorder %s31, %s34
    %p40 = scmp.eq.s32.totalorder %s9, 0
    %p41 = por %p39, %p40
    %p42 = scmp.ne.s32.totalorder %s31, %s34
    %p43 = scmp.eq.s32.totalorder %s14, 3
    %p44 = por %p42, %p43
    %p45 = scmp.ne.s32.totalorder %s34, %s35
    %p46 = scmp.eq.s32.totalorder %s14, 0
    %p47 = por %p45, %p46
    %p48 = scmp.ne.s32.totalorder %s34, %s35
    %p49 = scmp.eq.s32.totalorder %s15, 3
    %p50 = por %p48, %p49
    %p52 = scmp.ne.s32.totalorder %s35, %s51
    %p53 = scmp.eq.s32.totalorder %s15, 0
    %p54 = por %p52, %p53
    %s55 = ssub.s32 %s16, %s28
    %p56 = scmp.eq.s32.totalorder %s55, 0
    %s58 = sadd.s32 %s57, 1
    %s59 = scalar_select %p56, %s57, %s58
    %p62 = pneg %p56
    %p63 = scmp.eq.s32.totalorder %s9, 3
    %p64 = por %p62, %p63
    %p65 = scmp.ne.s32.totalorder %s57, %s60
    %p66 = scmp.eq.s32.totalorder %s9, 0
    %p67 = por %p65, %p66
    %p68 = scmp.ne.s32.totalorder %s57, %s60
    %p69 = scmp.eq.s32.totalorder %s14, 3
    %p70 = por %p68, %p69
    %p71 = scmp.ne.s32.totalorder %s60, %s61
    %p72 = scmp.eq.s32.totalorder %s14, 0
    %p73 = por %p71, %p72
    %p74 = scmp.ne.s32.totalorder %s60, %s61
    %p75 = scmp.eq.s32.totalorder %s15, 3
    %p76 = por %p74, %p75
    %p78 = scmp.ne.s32.totalorder %s61, %s77
    %p79 = scmp.eq.s32.totalorder %s15, 0
    %p80 = por %p78, %p79
    %s81 = ssub.s32 %s16, %s28
    %p82 = scmp.eq.s32.totalorder %s81, 0
    %s84 = sadd.s32 %s83, 1
    %s85 = scalar_select %p82, %s83, %s84
    %p88 = pneg %p82
    %p89 = scmp.eq.s32.totalorder %s9, 3
    %p90 = por %p88, %p89
    %p91 = scmp.ne.s32.totalorder %s83, %s86
    %p92 = scmp.eq.s32.totalorder %s9, 0
    %p93 = por %p91, %p92
    %p94 = scmp.ne.s32.totalorder %s83, %s86
    %p95 = scmp.eq.s32.totalorder %s14, 3
    %p96 = por %p94, %p95
    %p97 = scmp.ne.s32.totalorder %s86, %s87
    %p98 = scmp.eq.s32.totalorder %s14, 0
    %p99 = por %p97, %p98
    %p100 = scmp.ne.s32.totalorder %s86, %s87
    %p101 = scmp.eq.s32.totalorder %s15, 3
    %p102 = por %p100, %p101
    %p104 = scmp.ne.s32.totalorder %s87, %s103
    %p105 = scmp.eq.s32.totalorder %s15, 0
    %p106 = por %p104, %p105
    %s107 = ssub.s32 %s17, %s24
    %s108 = ssub.s32 %s16, %s28
    %s109 = sor.u32 %s107, %s108
    %p110 = scmp.eq.s32.totalorder %s109, 0
    %s112 = sadd.s32 %s111, 1
    %s113 = scalar_select %p110, %s111, %s112
    %p116 = pneg %p110
    %p117 = scmp.eq.s32.totalorder %s9, 3
    %p118 = por %p116, %p117
    %p119 = scmp.ne.s32.totalorder %s111, %s114
    %p120 = scmp.eq.s32.totalorder %s9, 0
    %p121 = por %p119, %p120
    %p122 = scmp.ne.s32.totalorder %s111, %s114
    %p123 = scmp.eq.s32.totalorder %s14, 3
    %p124 = por %p122, %p123
    %p125 = scmp.ne.s32.totalorder %s114, %s115
    %p126 = scmp.eq.s32.totalorder %s14, 0
    %p127 = por %p125, %p126
    %p128 = scmp.ne.s32.totalorder %s114, %s115
    %p129 = scmp.eq.s32.totalorder %s15, 3
    %p130 = por %p128, %p129
    %p132 = scmp.ne.s32.totalorder %s115, %s131
    %p133 = scmp.eq.s32.totalorder %s15, 0
    %p134 = por %p132, %p133
    %p135 = scmp.le.s32.totalorder 1, %s9
    %p136 = scmp.lt.s32.totalorder %s9, 5
    %p137 = pnand %p135, %p136
    %p138 = pneg %p137
    // Predicated region
    $region9: #{tpu_custom_call.1} parent=5 // pred_check
      _
    $region10: #{tpu_custom_call.1} parent=5 // pred_check_branch
      %140 = sbr.rel (%p137) target = $region12
    $region11: #{tpu_custom_call.1} parent=5 // pred_region
      %s141 = ssub.s32 %s9, 1
      // Predicated region
      $region13: #{tpu_custom_call.1} parent=11 // pred_check
        %p142 = pneg %p73
      $region14: #{tpu_custom_call.1} parent=11 // pred_check_branch
        %144 = sbr.rel (%p142) target = $region16
      $region15: #{tpu_custom_call.1} parent=11 // pred_region
        %p145 = scmp.lt.s32.totalorder %s18, 0
        %s146 = scalar_select %p145, %s18, 0
        %s147 = smul.addr %s146, 4
        %s148 = scalar_lea.vmem %s1, %s147
      $region16: #{tpu_custom_call.1} parent=11 // pred_fallthru
        _
      // Predicated region
      $region17: #{tpu_custom_call.1} parent=11 // pred_check
        %p149 = pneg %p99
      $region18: #{tpu_custom_call.1} parent=11 // pred_check_branch
        %151 = sbr.rel (%p149) target = $region20
      $region19: #{tpu_custom_call.1} parent=11 // pred_region
        %p152 = scmp.lt.s32.totalorder %s18, 0
        %s153 = scalar_select %p152, %s18, 0
        %s154 = scalar_lea.vmem %s2, %s153
      $region20: #{tpu_custom_call.1} parent=11 // pred_fallthru
        _
    $region12: #{tpu_custom_call.1} parent=5 // pred_fallthru
      _
    %p155 = scmp.lt.s32.totalorder %s9, 4
    // Predicated region
    $region21: #{tpu_custom_call.1} parent=5 // pred_check
      %p156 = pneg %p155
    $region22: #{tpu_custom_call.1} parent=5 // pred_check_branch
      %158 = sbr.rel (%p156) target = $region24
    $region23: #{tpu_custom_call.1} parent=5 // pred_region
      // Predicated region
      $region25: #{tpu_custom_call.1} parent=23 // pred_check
        %p159 = pneg %p41
      $region26: #{tpu_custom_call.1} parent=23 // pred_check_branch
        %161 = sbr.rel (%p159) target = $region28
      $region27: #{tpu_custom_call.1} parent=23 // pred_region
        %p162 = scmp.lt.s32.totalorder %s17, 3
        %s163 = scalar_select %p162, %s17, 3
        %s164 = smul.addr %s163, 30
        %s165 = smul.addr %s164, 4
        %s166 = scalar_lea.vmem %s0, %s165
      $region28: #{tpu_custom_call.1} parent=23 // pred_fallthru
        _
    $region24: #{tpu_custom_call.1} parent=5 // pred_fallthru
      _
    %p167 = scmp.le.s32.totalorder 1, %s9
    %p168 = scmp.lt.s32.totalorder %s9, 5
    %p169 = pnand %p167, %p168
    %p170 = pneg %p169
    // Predicated region
    $region29: #{tpu_custom_call.1} parent=5 // pred_check
      _
    $region30: #{tpu_custom_call.1} parent=5 // pred_check_branch
      %172 = sbr.rel (%p169) target = $region32
    $region31: #{tpu_custom_call.1} parent=5 // pred_region
      %s173 = ssub.s32 %s9, 1
      %p174 = scmp.lt.s32.totalorder %s19, 3
      %s175 = scalar_select %p174, %s19, 3
      %s176 = smul.addr %s175, 30
      %s177 = smul.addr %s176, 4
      %s178 = scalar_lea.vmem %s0, %s177
      %p179 = pneg %p47
      %p180 = pneg %p44
      %p181 = scmp.lt.s32.totalorder %s18, 0
      %s182 = scalar_select %p181, %s18, 0
      %s183 = smul.addr %s182, 4
      %s184 = scalar_lea.vmem %s1, %s183
      %p185 = pneg %p73
      %p186 = pneg %p70
      %p187 = scmp.lt.s32.totalorder %s18, 0
      %s188 = scalar_select %p187, %s18, 0
      %s189 = scalar_lea.vmem %s2, %s188
      %p190 = pneg %p99
      %p191 = pneg %p96
      %p192 = pneg %p127
      %p193 = pneg %p124
      %p194 = scmp.lt.s32.totalorder %s19, 3
      %s195 = scalar_select %p194, %s19, 3
      %p196 = scmp.lt.s32.totalorder %s18, 0
      %s197 = scalar_select %p196, %s18, 0
      %s198 = smul.addr %s195, 16
      %s199 = sadd.s32 %s197, %s198
      %s200 = smul.addr %s199, 8
      %s201 = scalar_lea.vmem %s3, %s200
      %p202 = scmp.lt.s32.totalorder %s19, 3
      %s203 = scalar_select %p202, %s19, 3
      %s204 = smul.addr %s203, 30
      %s205 = smul.addr %s204, 4
      %s206 = scalar_lea.vmem %s0, %s205
      %p207 = scmp.lt.s32.totalorder %s18, 0
      %s208 = scalar_select %p207, %s18, 0
      %s209 = smul.addr %s208, 4
      %s210 = scalar_lea.vmem %s1, %s209
      %p211 = scmp.lt.s32.totalorder %s18, 0
      %s212 = scalar_select %p211, %s18, 0
      %s213 = scalar_lea.vmem %s2, %s212
      %p214 = scmp.lt.s32.totalorder %s19, 3
      %s215 = scalar_select %p214, %s19, 3
      %p216 = scmp.lt.s32.totalorder %s18, 0
      %s217 = scalar_select %p216, %s18, 0
      %s218 = smul.addr %s215, 16
      %s219 = sadd.s32 %s217, %s218
      %s220 = smul.addr %s219, 8
      %s221 = scalar_lea.vmem %s3, %s220
      %v223 = vld [vmem:[%s206] sm:$0xf]
      %v224 = vld [vmem:[%s206 + $0x4] sm:$0xf]
      %v225 = vld [vmem:[%s206 + $0xc] sm:$0xf]
      %v226 = vld [vmem:[%s206 + $0x10] sm:$0xf]
      %v227 = vld [vmem:[%s206 + $0x18] sm:$0xf]
      %v228 = vld [vmem:[%s206 + $0x1c] sm:$0xf]
      %v229 = vld [vmem:[%s206 + $0x24] sm:$0xf]
      %v230 = vld [vmem:[%s206 + $0x28] sm:$0xf]
      %v231 = vld [vmem:[%s206 + $0x30] sm:$0xf]
      %v232 = vld [vmem:[%s206 + $0x34] sm:$0xf]
      %v233 = vld [vmem:[%s206 + $0x3c] sm:$0xf]
      %v234 = vld [vmem:[%s206 + $0x40] sm:$0xf]
      %v235 = vld [vmem:[%s206 + $0x48] sm:$0xf]
      %v236 = vld [vmem:[%s206 + $0x4c] sm:$0xf]
      %v237 = vld [vmem:[%s206 + $0x54] sm:$0xf]
      %v238 = vld [vmem:[%s206 + $0x58] sm:$0xf]
      %vm239 = vcmask 27648
      %240 = vst.msk [vmem:[#allocation2] sm:$0xf] %vm239, %v223
      %241 = vst.msk [vmem:[#allocation2 + $0x4] sm:$0xf] %vm239, %v224
      %242 = vst.msk [vmem:[#allocation2 + $0x8] sm:$0xf] %vm239, %v225
      %243 = vst.msk [vmem:[#allocation2 + $0xc] sm:$0xf] %vm239, %v226
      %244 = vst.msk [vmem:[#allocation2 + $0x10] sm:$0xf] %vm239, %v227
      %245 = vst.msk [vmem:[#allocation2 + $0x14] sm:$0xf] %vm239, %v228
      %246 = vst.msk [vmem:[#allocation2 + $0x18] sm:$0xf] %vm239, %v229
      %247 = vst.msk [vmem:[#allocation2 + $0x1c] sm:$0xf] %vm239, %v230
      %248 = vst.msk [vmem:[#allocation2 + $0x20] sm:$0xf] %vm239, %v231
      %249 = vst.msk [vmem:[#allocation2 + $0x24] sm:$0xf] %vm239, %v232
      %250 = vst.msk [vmem:[#allocation2 + $0x28] sm:$0xf] %vm239, %v233
      %251 = vst.msk [vmem:[#allocation2 + $0x2c] sm:$0xf] %vm239, %v234
      %252 = vst.msk [vmem:[#allocation2 + $0x30] sm:$0xf] %vm239, %v235
      %253 = vst.msk [vmem:[#allocation2 + $0x34] sm:$0xf] %vm239, %v236
      %254 = vst.msk [vmem:[#allocation2 + $0x38] sm:$0xf] %vm239, %v237
      %255 = vst.msk [vmem:[#allocation2 + $0x3c] sm:$0xf] %vm239, %v238
      %v256 = vld [vmem:[%s206] sm:$0xf]
      %v257 = vld [vmem:[%s206 + $0x4] sm:$0xf]
      %v258 = vld [vmem:[%s206 + $0x8] sm:$0x1]
      %v259 = vld [vmem:[%s206 + $0xc] sm:$0xf]
      %v260 = vld [vmem:[%s206 + $0x10] sm:$0xf]
      %v261 = vld [vmem:[%s206 + $0x14] sm:$0x1]
      %v262 = vld [vmem:[%s206 + $0x18] sm:$0xf]
      %v263 = vld [vmem:[%s206 + $0x1c] sm:$0xf]
      %v264 = vld [vmem:[%s206 + $0x20] sm:$0x1]
      %v265 = vld [vmem:[%s206 + $0x24] sm:$0xf]
      %v266 = vld [vmem:[%s206 + $0x28] sm:$0xf]
      %v267 = vld [vmem:[%s206 + $0x2c] sm:$0x1]
      %v268 = vld [vmem:[%s206 + $0x30] sm:$0xf]
      %v269 = vld [vmem:[%s206 + $0x34] sm:$0xf]
      %v270 = vld [vmem:[%s206 + $0x38] sm:$0x1]
      %v271 = vld [vmem:[%s206 + $0x3c] sm:$0xf]
      %v272 = vld [vmem:[%s206 + $0x40] sm:$0xf]
      %v273 = vld [vmem:[%s206 + $0x44] sm:$0x1]
      %v274 = vld [vmem:[%s206 + $0x48] sm:$0xf]
      %v275 = vld [vmem:[%s206 + $0x4c] sm:$0xf]
      %v276 = vld [vmem:[%s206 + $0x50] sm:$0x1]
      %v277 = vld [vmem:[%s206 + $0x54] sm:$0xf]
      %v278 = vld [vmem:[%s206 + $0x58] sm:$0xf]
      %v279 = vld [vmem:[%s206 + $0x5c] sm:$0x1]
      %vm280 = vsmask.f32 3328
      %vm281 = vsmask.f32 7440
      %vm282 = vmor %vm280, %vm281
      %v284 = vshrl.u32 %v256, 16
      %v286 = vrot.slane %v284, 4
      %v287 = vshll.u32 %v256, 16
      %v289 = vrot.slane %v287, 5
      %v290 = vor.u32 %v286, %v289
      %v291 = vrot.slane %v290, 4
      %v293 = vshll.u32 %v257, 16
      %v295 = vrot.slane %v293, 5
      %v296 = vsel %vm282, %v291, %v295
      %v297 = vshrl.u32 %v257, 16
      %v299 = vrot.slane %v297, 4
      %v300 = vor.u32 %v299, %v295
      %v301 = vrot.slane %v300, 4
      %v303 = vshll.u32 %v258, 16
      %v305 = vrot.slane %v303, 5
      %v306 = vsel %vm282, %v301, %v305
      %v308 = vshrl.u32 %v259, 16
      %v310 = vrot.slane %v308, 4
      %v311 = vshll.u32 %v259, 16
      %v313 = vrot.slane %v311, 5
      %v314 = vor.u32 %v310, %v313
      %v315 = vrot.slane %v314, 4
      %v317 = vshll.u32 %v260, 16
      %v319 = vrot.slane %v317, 5
      %v320 = vsel %vm282, %v315, %v319
      %v321 = vshrl.u32 %v260, 16
      %v323 = vrot.slane %v321, 4
      %v324 = vor.u32 %v323, %v319
      %v325 = vrot.slane %v324, 4
      %v327 = vshll.u32 %v261, 16
      %v329 = vrot.slane %v327, 5
      %v330 = vsel %vm282, %v325, %v329
      %v332 = vshrl.u32 %v262, 16
      %v334 = vrot.slane %v332, 4
      %v335 = vshll.u32 %v262, 16
      %v337 = vrot.slane %v335, 5
      %v338 = vor.u32 %v334, %v337
      %v339 = vrot.slane %v338, 4
      %v341 = vshll.u32 %v263, 16
      %v343 = vrot.slane %v341, 5
      %v344 = vsel %vm282, %v339, %v343
      %v345 = vshrl.u32 %v263, 16
      %v347 = vrot.slane %v345, 4
      %v348 = vor.u32 %v347, %v343
      %v349 = vrot.slane %v348, 4
      %v351 = vshll.u32 %v264, 16
      %v353 = vrot.slane %v351, 5
      %v354 = vsel %vm282, %v349, %v353
      %v356 = vshrl.u32 %v265, 16
      %v358 = vrot.slane %v356, 4
      %v359 = vshll.u32 %v265, 16
      %v361 = vrot.slane %v359, 5
      %v362 = vor.u32 %v358, %v361
      %v363 = vrot.slane %v362, 4
      %v365 = vshll.u32 %v266, 16
      %v367 = vrot.slane %v365, 5
      %v368 = vsel %vm282, %v363, %v367
      %v369 = vshrl.u32 %v266, 16
      %v371 = vrot.slane %v369, 4
      %v372 = vor.u32 %v371, %v367
      %v373 = vrot.slane %v372, 4
      %v375 = vshll.u32 %v267, 16
      %v377 = vrot.slane %v375, 5
      %v378 = vsel %vm282, %v373, %v377
      %v380 = vshrl.u32 %v268, 16
      %v382 = vrot.slane %v380, 4
      %v383 = vshll.u32 %v268, 16
      %v385 = vrot.slane %v383, 5
      %v386 = vor.u32 %v382, %v385
      %v387 = vrot.slane %v386, 4
      %v389 = vshll.u32 %v269, 16
      %v391 = vrot.slane %v389, 5
      %v392 = vsel %vm282, %v387, %v391
      %v393 = vshrl.u32 %v269, 16
      %v395 = vrot.slane %v393, 4
      %v396 = vor.u32 %v395, %v391
      %v397 = vrot.slane %v396, 4
      %v399 = vshll.u32 %v270, 16
      %v401 = vrot.slane %v399, 5
      %v402 = vsel %vm282, %v397, %v401
      %v404 = vshrl.u32 %v271, 16
      %v406 = vrot.slane %v404, 4
      %v407 = vshll.u32 %v271, 16
      %v409 = vrot.slane %v407, 5
      %v410 = vor.u32 %v406, %v409
      %v411 = vrot.slane %v410, 4
      %v413 = vshll.u32 %v272, 16
      %v415 = vrot.slane %v413, 5
      %v416 = vsel %vm282, %v411, %v415
      %v417 = vshrl.u32 %v272, 16
      %v419 = vrot.slane %v417, 4
      %v420 = vor.u32 %v419, %v415
      %v421 = vrot.slane %v420, 4
      %v423 = vshll.u32 %v273, 16
      %v425 = vrot.slane %v423, 5
      %v426 = vsel %vm282, %v421, %v425
      %v428 = vshrl.u32 %v274, 16
      %v430 = vrot.slane %v428, 4
      %v431 = vshll.u32 %v274, 16
      %v433 = vrot.slane %v431, 5
      %v434 = vor.u32 %v430, %v433
      %v435 = vrot.slane %v434, 4
      %v437 = vshll.u32 %v275, 16
      %v439 = vrot.slane %v437, 5
      %v440 = vsel %vm282, %v435, %v439
      %v441 = vshrl.u32 %v275, 16
      %v443 = vrot.slane %v441, 4
      %v444 = vor.u32 %v443, %v439
      %v445 = vrot.slane %v444, 4
      %v447 = vshll.u32 %v276, 16
      %v449 = vrot.slane %v447, 5
      %v450 = vsel %vm282, %v445, %v449
      %v452 = vshrl.u32 %v277, 16
      %v454 = vrot.slane %v452, 4
      %v455 = vshll.u32 %v277, 16
      %v457 = vrot.slane %v455, 5
      %v458 = vor.u32 %v454, %v457
      %v459 = vrot.slane %v458, 4
      %v461 = vshll.u32 %v278, 16
      %v463 = vrot.slane %v461, 5
      %v464 = vsel %vm282, %v459, %v463
      %v465 = vshrl.u32 %v278, 16
      %v467 = vrot.slane %v465, 4
      %v468 = vor.u32 %v467, %v463
      %v469 = vrot.slane %v468, 4
      %v471 = vshll.u32 %v279, 16
      %v473 = vrot.slane %v471, 5
      %v474 = vsel %vm282, %v469, %v473
      %475 = vrot.lane.b32.xlu0 %v296, 4
      %v476 = vpop.permute.xlu0 %475
      %477 = vrot.lane.b32.xlu0 %v306, 4
      %v478 = vpop.permute.xlu0 %477
      %479 = vrot.lane.b32.xlu0 %v320, 4
      %v480 = vpop.permute.xlu0 %479
      %481 = vrot.lane.b32.xlu0 %v330, 4
      %v482 = vpop.permute.xlu0 %481
      %483 = vrot.lane.b32.xlu0 %v344, 4
      %v484 = vpop.permute.xlu0 %483
      %485 = vrot.lane.b32.xlu0 %v354, 4
      %v486 = vpop.permute.xlu0 %485
      %487 = vrot.lane.b32.xlu0 %v368, 4
      %v488 = vpop.permute.xlu0 %487
      %489 = vrot.lane.b32.xlu0 %v378, 4
      %v490 = vpop.permute.xlu0 %489
      %491 = vrot.lane.b32.xlu0 %v392, 4
      %v492 = vpop.permute.xlu0 %491
      %493 = vrot.lane.b32.xlu0 %v402, 4
      %v494 = vpop.permute.xlu0 %493
      %495 = vrot.lane.b32.xlu0 %v416, 4
      %v496 = vpop.permute.xlu0 %495
      %497 = vrot.lane.b32.xlu0 %v426, 4
      %v498 = vpop.permute.xlu0 %497
      %499 = vrot.lane.b32.xlu0 %v440, 4
      %v500 = vpop.permute.xlu0 %499
      %501 = vrot.lane.b32.xlu0 %v450, 4
      %v502 = vpop.permute.xlu0 %501
      %503 = vrot.lane.b32.xlu0 %v464, 4
      %v504 = vpop.permute.xlu0 %503
      %505 = vrot.lane.b32.xlu0 %v474, 4
      %v506 = vpop.permute.xlu0 %505
      %vm523 = vcmask 60448
      %524 = vst.msk [vmem:[#allocation2] sm:$0xf] %vm523, %v476
      %525 = vst.msk [vmem:[#allocation2 + $0x4] sm:$0xf] %vm523, %v478
      %526 = vst.msk [vmem:[#allocation2 + $0x8] sm:$0xf] %vm523, %v480
      %527 = vst.msk [vmem:[#allocation2 + $0xc] sm:$0xf] %vm523, %v482
      %528 = vst.msk [vmem:[#allocation2 + $0x10] sm:$0xf] %vm523, %v484
      %529 = vst.msk [vmem:[#allocation2 + $0x14] sm:$0xf] %vm523, %v486
      %530 = vst.msk [vmem:[#allocation2 + $0x18] sm:$0xf] %vm523, %v488
      %531 = vst.msk [vmem:[#allocation2 + $0x1c] sm:$0xf] %vm523, %v490
      %532 = vst.msk [vmem:[#allocation2 + $0x20] sm:$0xf] %vm523, %v492
      %533 = vst.msk [vmem:[#allocation2 + $0x24] sm:$0xf] %vm523, %v494
      %534 = vst.msk [vmem:[#allocation2 + $0x28] sm:$0xf] %vm523, %v496
      %535 = vst.msk [vmem:[#allocation2 + $0x2c] sm:$0xf] %vm523, %v498
      %536 = vst.msk [vmem:[#allocation2 + $0x30] sm:$0xf] %vm523, %v500
      %537 = vst.msk [vmem:[#allocation2 + $0x34] sm:$0xf] %vm523, %v502
      %538 = vst.msk [vmem:[#allocation2 + $0x38] sm:$0xf] %vm523, %v504
      %539 = vst.msk [vmem:[#allocation2 + $0x3c] sm:$0xf] %vm523, %v506
      %v540 = vld [vmem:[%s206] sm:$0xe]
      %v541 = vld [vmem:[%s206 + $0x4] sm:$0xf]
      %v542 = vld [vmem:[%s206 + $0x8] sm:$0x1]
      %v543 = vld [vmem:[%s206 + $0xc] sm:$0xe]
      %v544 = vld [vmem:[%s206 + $0x10] sm:$0xf]
      %v545 = vld [vmem:[%s206 + $0x14] sm:$0x1]
      %v546 = vld [vmem:[%s206 + $0x18] sm:$0xe]
      %v547 = vld [vmem:[%s206 + $0x1c] sm:$0xf]
      %v548 = vld [vmem:[%s206 + $0x20] sm:$0x1]
      %v549 = vld [vmem:[%s206 + $0x24] sm:$0xe]
      %v550 = vld [vmem:[%s206 + $0x28] sm:$0xf]
      %v551 = vld [vmem:[%s206 + $0x2c] sm:$0x1]
      %v552 = vld [vmem:[%s206 + $0x30] sm:$0xe]
      %v553 = vld [vmem:[%s206 + $0x34] sm:$0xf]
      %v554 = vld [vmem:[%s206 + $0x38] sm:$0x1]
      %v555 = vld [vmem:[%s206 + $0x3c] sm:$0xe]
      %v556 = vld [vmem:[%s206 + $0x40] sm:$0xf]
      %v557 = vld [vmem:[%s206 + $0x44] sm:$0x1]
      %v558 = vld [vmem:[%s206 + $0x48] sm:$0xe]
      %v559 = vld [vmem:[%s206 + $0x4c] sm:$0xf]
      %v560 = vld [vmem:[%s206 + $0x50] sm:$0x1]
      %v561 = vld [vmem:[%s206 + $0x54] sm:$0xe]
      %v562 = vld [vmem:[%s206 + $0x58] sm:$0xf]
      %v563 = vld [vmem:[%s206 + $0x5c] sm:$0x1]
      %vm588 = vcmask 1042432
      %vm589 = vcmask 1046532
      %vm590 = vmor %vm588, %vm589
      %v591 = vrot.slane %v540, 5
      %v592 = vrot.slane %v591, 4
      %v593 = vrot.slane %v541, 5
      %v594 = vsel %vm590, %v592, %v593
      %v595 = vrot.slane %v593, 4
      %v596 = vrot.slane %v542, 5
      %v597 = vsel %vm590, %v595, %v596
      %v598 = vrot.slane %v543, 5
      %v599 = vrot.slane %v598, 4
      %v600 = vrot.slane %v544, 5
      %v601 = vsel %vm590, %v599, %v600
      %v602 = vrot.slane %v600, 4
      %v603 = vrot.slane %v545, 5
      %v604 = vsel %vm590, %v602, %v603
      %v605 = vrot.slane %v546, 5
      %v606 = vrot.slane %v605, 4
      %v607 = vrot.slane %v547, 5
      %v608 = vsel %vm590, %v606, %v607
      %v609 = vrot.slane %v607, 4
      %v610 = vrot.slane %v548, 5
      %v611 = vsel %vm590, %v609, %v610
      %v612 = vrot.slane %v549, 5
      %v613 = vrot.slane %v612, 4
      %v614 = vrot.slane %v550, 5
      %v615 = vsel %vm590, %v613, %v614
      %v616 = vrot.slane %v614, 4
      %v617 = vrot.slane %v551, 5
      %v618 = vsel %vm590, %v616, %v617
      %v619 = vrot.slane %v552, 5
      %v620 = vrot.slane %v619, 4
      %v621 = vrot.slane %v553, 5
      %v622 = vsel %vm590, %v620, %v621
      %v623 = vrot.slane %v621, 4
      %v624 = vrot.slane %v554, 5
      %v625 = vsel %vm590, %v623, %v624
      %v626 = vrot.slane %v555, 5
      %v627 = vrot.slane %v626, 4
      %v628 = vrot.slane %v556, 5
      %v629 = vsel %vm590, %v627, %v628
      %v630 = vrot.slane %v628, 4
      %v631 = vrot.slane %v557, 5
      %v632 = vsel %vm590, %v630, %v631
      %v633 = vrot.slane %v558, 5
      %v634 = vrot.slane %v633, 4
      %v635 = vrot.slane %v559, 5
      %v636 = vsel %vm590, %v634, %v635
      %v637 = vrot.slane %v635, 4
      %v638 = vrot.slane %v560, 5
      %v639 = vsel %vm590, %v637, %v638
      %v640 = vrot.slane %v561, 5
      %v641 = vrot.slane %v640, 4
      %v642 = vrot.slane %v562, 5
      %v643 = vsel %vm590, %v641, %v642
      %v644 = vrot.slane %v642, 4
      %v645 = vrot.slane %v563, 5
      %v646 = vsel %vm590, %v644, %v645
      %647 = vrot.lane.b32.xlu0 %v594, 8
      %v648 = vpop.permute.xlu0 %647
      %649 = vrot.lane.b32.xlu0 %v597, 8
      %v650 = vpop.permute.xlu0 %649
      %651 = vrot.lane.b32.xlu0 %v601, 8
      %v652 = vpop.permute.xlu0 %651
      %653 = vrot.lane.b32.xlu0 %v604, 8
      %v654 = vpop.permute.xlu0 %653
      %655 = vrot.lane.b32.xlu0 %v608, 8
      %v656 = vpop.permute.xlu0 %655
      %657 = vrot.lane.b32.xlu0 %v611, 8
      %v658 = vpop.permute.xlu0 %657
      %659 = vrot.lane.b32.xlu0 %v615, 8
      %v660 = vpop.permute.xlu0 %659
      %661 = vrot.lane.b32.xlu0 %v618, 8
      %v662 = vpop.permute.xlu0 %661
      %663 = vrot.lane.b32.xlu0 %v622, 8
      %v664 = vpop.permute.xlu0 %663
      %665 = vrot.lane.b32.xlu0 %v625, 8
      %v666 = vpop.permute.xlu0 %665
      %667 = vrot.lane.b32.xlu0 %v629, 8
      %v668 = vpop.permute.xlu0 %667
      %669 = vrot.lane.b32.xlu0 %v632, 8
      %v670 = vpop.permute.xlu0 %669
      %671 = vrot.lane.b32.xlu0 %v636, 8
      %v672 = vpop.permute.xlu0 %671
      %673 = vrot.lane.b32.xlu0 %v639, 8
      %v674 = vpop.permute.xlu0 %673
      %675 = vrot.lane.b32.xlu0 %v643, 8
      %v676 = vpop.permute.xlu0 %675
      %677 = vrot.lane.b32.xlu0 %v646, 8
      %v678 = vpop.permute.xlu0 %677
      %vm695 = vcmask 93248
      %696 = vst.msk [vmem:[#allocation2] sm:$0xf] %vm695, %v648
      %697 = vst.msk [vmem:[#allocation2 + $0x4] sm:$0xf] %vm695, %v650
      %698 = vst.msk [vmem:[#allocation2 + $0x8] sm:$0xf] %vm695, %v652
      %699 = vst.msk [vmem:[#allocation2 + $0xc] sm:$0xf] %vm695, %v654
      %700 = vst.msk [vmem:[#allocation2 + $0x10] sm:$0xf] %vm695, %v656
      %701 = vst.msk [vmem:[#allocation2 + $0x14] sm:$0xf] %vm695, %v658
      %702 = vst.msk [vmem:[#allocation2 + $0x18] sm:$0xf] %vm695, %v660
      %703 = vst.msk [vmem:[#allocation2 + $0x1c] sm:$0xf] %vm695, %v662
      %704 = vst.msk [vmem:[#allocation2 + $0x20] sm:$0xf] %vm695, %v664
      %705 = vst.msk [vmem:[#allocation2 + $0x24] sm:$0xf] %vm695, %v666
      %706 = vst.msk [vmem:[#allocation2 + $0x28] sm:$0xf] %vm695, %v668
      %707 = vst.msk [vmem:[#allocation2 + $0x2c] sm:$0xf] %vm695, %v670
      %708 = vst.msk [vmem:[#allocation2 + $0x30] sm:$0xf] %vm695, %v672
      %709 = vst.msk [vmem:[#allocation2 + $0x34] sm:$0xf] %vm695, %v674
      %710 = vst.msk [vmem:[#allocation2 + $0x38] sm:$0xf] %vm695, %v676
      %711 = vst.msk [vmem:[#allocation2 + $0x3c] sm:$0xf] %vm695, %v678
      %s712 = scalar_lea.vmem %s206, 12
      %v713 = vld [vmem:[%s712] sm:$0xf]
      %v714 = vld [vmem:[%s712 + $0x4] sm:$0xf]
      %v715 = vld [vmem:[%s712 + $0xc] sm:$0xf]
      %v716 = vld [vmem:[%s712 + $0x10] sm:$0xf]
      %v717 = vld [vmem:[%s712 + $0x18] sm:$0xf]
      %v718 = vld [vmem:[%s712 + $0x1c] sm:$0xf]
      %v719 = vld [vmem:[%s712 + $0x24] sm:$0xf]
      %v720 = vld [vmem:[%s712 + $0x28] sm:$0xf]
      %v721 = vld [vmem:[%s712 + $0x30] sm:$0xf]
      %v722 = vld [vmem:[%s712 + $0x34] sm:$0xf]
      %v723 = vld [vmem:[%s712 + $0x3c] sm:$0xf]
      %v724 = vld [vmem:[%s712 + $0x40] sm:$0xf]
      %v725 = vld [vmem:[%s712 + $0x48] sm:$0xf]
      %v726 = vld [vmem:[%s712 + $0x4c] sm:$0xf]
      %v727 = vld [vmem:[%s712 + $0x54] sm:$0xf]
      %v728 = vld [vmem:[%s712 + $0x58] sm:$0xf]
      %745 = vrot.lane.b32.xlu0 %v713, 12
      %v746 = vpop.permute.xlu0 %745
      %747 = vrot.lane.b32.xlu0 %v714, 12
      %v748 = vpop.permute.xlu0 %747
      %749 = vrot.lane.b32.xlu0 %v715, 12
      %v750 = vpop.permute.xlu0 %749
      %751 = vrot.lane.b32.xlu0 %v716, 12
      %v752 = vpop.permute.xlu0 %751
      %753 = vrot.lane.b32.xlu0 %v717, 12
      %v754 = vpop.permute.xlu0 %753
      %755 = vrot.lane.b32.xlu0 %v718, 12
      %v756 = vpop.permute.xlu0 %755
      %757 = vrot.lane.b32.xlu0 %v719, 12
      %v758 = vpop.permute.xlu0 %757
      %759 = vrot.lane.b32.xlu0 %v720, 12
      %v760 = vpop.permute.xlu0 %759
      %761 = vrot.lane.b32.xlu0 %v721, 12
      %v762 = vpop.permute.xlu0 %761
      %763 = vrot.lane.b32.xlu0 %v722, 12
      %v764 = vpop.permute.xlu0 %763
      %765 = vrot.lane.b32.xlu0 %v723, 12
      %v766 = vpop.permute.xlu0 %765
      %767 = vrot.lane.b32.xlu0 %v724, 12
      %v768 = vpop.permute.xlu0 %767
      %769 = vrot.lane.b32.xlu0 %v725, 12
      %v770 = vpop.permute.xlu0 %769
      %771 = vrot.lane.b32.xlu0 %v726, 12
      %v772 = vpop.permute.xlu0 %771
      %773 = vrot.lane.b32.xlu0 %v727, 12
      %v774 = vpop.permute.xlu0 %773
      %775 = vrot.lane.b32.xlu0 %v728, 12
      %v776 = vpop.permute.xlu0 %775
      %vm793 = vcmask 126048
      %794 = vst.msk [vmem:[#allocation2] sm:$0xf] %vm793, %v746
      %795 = vst.msk [vmem:[#allocation2 + $0x4] sm:$0xf] %vm793, %v748
      %796 = vst.msk [vmem:[#allocation2 + $0x8] sm:$0xf] %vm793, %v750
      %797 = vst.msk [vmem:[#allocation2 + $0xc] sm:$0xf] %vm793, %v752
      %798 = vst.msk [vmem:[#allocation2 + $0x10] sm:$0xf] %vm793, %v754
      %799 = vst.msk [vmem:[#allocation2 + $0x14] sm:$0xf] %vm793, %v756
      %800 = vst.msk [vmem:[#allocation2 + $0x18] sm:$0xf] %vm793, %v758
      %801 = vst.msk [vmem:[#allocation2 + $0x1c] sm:$0xf] %vm793, %v760
      %802 = vst.msk [vmem:[#allocation2 + $0x20] sm:$0xf] %vm793, %v762
      %803 = vst.msk [vmem:[#allocation2 + $0x24] sm:$0xf] %vm793, %v764
      %804 = vst.msk [vmem:[#allocation2 + $0x28] sm:$0xf] %vm793, %v766
      %805 = vst.msk [vmem:[#allocation2 + $0x2c] sm:$0xf] %vm793, %v768
      %806 = vst.msk [vmem:[#allocation2 + $0x30] sm:$0xf] %vm793, %v770
      %807 = vst.msk [vmem:[#allocation2 + $0x34] sm:$0xf] %vm793, %v772
      %808 = vst.msk [vmem:[#allocation2 + $0x38] sm:$0xf] %vm793, %v774
      %809 = vst.msk [vmem:[#allocation2 + $0x3c] sm:$0xf] %vm793, %v776
      %v810 = vld [vmem:[%s712] sm:$0xf]
      %v811 = vld [vmem:[%s712 + $0x4] sm:$0xf]
      %v812 = vld [vmem:[%s712 + $0x8] sm:$0x1]
      %v813 = vld [vmem:[%s712 + $0xc] sm:$0xf]
      %v814 = vld [vmem:[%s712 + $0x10] sm:$0xf]
      %v815 = vld [vmem:[%s712 + $0x14] sm:$0x1]
      %v816 = vld [vmem:[%s712 + $0x18] sm:$0xf]
      %v817 = vld [vmem:[%s712 + $0x1c] sm:$0xf]
      %v818 = vld [vmem:[%s712 + $0x20] sm:$0x1]
      %v819 = vld [vmem:[%s712 + $0x24] sm:$0xf]
      %v820 = vld [vmem:[%s712 + $0x28] sm:$0xf]
      %v821 = vld [vmem:[%s712 + $0x2c] sm:$0x1]
      %v822 = vld [vmem:[%s712 + $0x30] sm:$0xf]
      %v823 = vld [vmem:[%s712 + $0x34] sm:$0xf]
      %v824 = vld [vmem:[%s712 + $0x38] sm:$0x1]
      %v825 = vld [vmem:[%s712 + $0x3c] sm:$0xf]
      %v826 = vld [vmem:[%s712 + $0x40] sm:$0xf]
      %v827 = vld [vmem:[%s712 + $0x44] sm:$0x1]
      %v828 = vld [vmem:[%s712 + $0x48] sm:$0xf]
      %v829 = vld [vmem:[%s712 + $0x4c] sm:$0xf]
      %v830 = vld [vmem:[%s712 + $0x50] sm:$0x1]
      %v831 = vld [vmem:[%s712 + $0x54] sm:$0xf]
      %v832 = vld [vmem:[%s712 + $0x58] sm:$0xf]
      %v833 = vld [vmem:[%s712 + $0x5c] sm:$0x1]
      %v835 = vshrl.u32 %v810, 16
      %v837 = vrot.slane %v835, 4
      %v838 = vshll.u32 %v810, 16
      %v840 = vrot.slane %v838, 5
      %v841 = vor.u32 %v837, %v840
      %v842 = vrot.slane %v841, 4
      %v844 = vshll.u32 %v811, 16
      %v846 = vrot.slane %v844, 5
      %v847 = vsel %vm282, %v842, %v846
      %v848 = vshrl.u32 %v811, 16
      %v850 = vrot.slane %v848, 4
      %v851 = vor.u32 %v850, %v846
      %v852 = vrot.slane %v851, 4
      %v854 = vshll.u32 %v812, 16
      %v856 = vrot.slane %v854, 5
      %v857 = vsel %vm282, %v852, %v856
      %v859 = vshrl.u32 %v813, 16
      %v861 = vrot.slane %v859, 4
      %v862 = vshll.u32 %v813, 16
      %v864 = vrot.slane %v862, 5
      %v865 = vor.u32 %v861, %v864
      %v866 = vrot.slane %v865, 4
      %v868 = vshll.u32 %v814, 16
      %v870 = vrot.slane %v868, 5
      %v871 = vsel %vm282, %v866, %v870
      %v872 = vshrl.u32 %v814, 16
      %v874 = vrot.slane %v872, 4
      %v875 = vor.u32 %v874, %v870
      %v876 = vrot.slane %v875, 4
      %v878 = vshll.u32 %v815, 16
      %v880 = vrot.slane %v878, 5
      %v881 = vsel %vm282, %v876, %v880
      %v883 = vshrl.u32 %v816, 16
      %v885 = vrot.slane %v883, 4
      %v886 = vshll.u32 %v816, 16
      %v888 = vrot.slane %v886, 5
      %v889 = vor.u32 %v885, %v888
      %v890 = vrot.slane %v889, 4
      %v892 = vshll.u32 %v817, 16
      %v894 = vrot.slane %v892, 5
      %v895 = vsel %vm282, %v890, %v894
      %v896 = vshrl.u32 %v817, 16
      %v898 = vrot.slane %v896, 4
      %v899 = vor.u32 %v898, %v894
      %v900 = vrot.slane %v899, 4
      %v902 = vshll.u32 %v818, 16
      %v904 = vrot.slane %v902, 5
      %v905 = vsel %vm282, %v900, %v904
      %v907 = vshrl.u32 %v819, 16
      %v909 = vrot.slane %v907, 4
      %v910 = vshll.u32 %v819, 16
      %v912 = vrot.slane %v910, 5
      %v913 = vor.u32 %v909, %v912
      %v914 = vrot.slane %v913, 4
      %v916 = vshll.u32 %v820, 16
      %v918 = vrot.slane %v916, 5
      %v919 = vsel %vm282, %v914, %v918
      %v920 = vshrl.u32 %v820, 16
      %v922 = vrot.slane %v920, 4
      %v923 = vor.u32 %v922, %v918
      %v924 = vrot.slane %v923, 4
      %v926 = vshll.u32 %v821, 16
      %v928 = vrot.slane %v926, 5
      %v929 = vsel %vm282, %v924, %v928
      %v931 = vshrl.u32 %v822, 16
      %v933 = vrot.slane %v931, 4
      %v934 = vshll.u32 %v822, 16
      %v936 = vrot.slane %v934, 5
      %v937 = vor.u32 %v933, %v936
      %v938 = vrot.slane %v937, 4
      %v940 = vshll.u32 %v823, 16
      %v942 = vrot.slane %v940, 5
      %v943 = vsel %vm282, %v938, %v942
      %v944 = vshrl.u32 %v823, 16
      %v946 = vrot.slane %v944, 4
      %v947 = vor.u32 %v946, %v942
      %v948 = vrot.slane %v947, 4
      %v950 = vshll.u32 %v824, 16
      %v952 = vrot.slane %v950, 5
      %v953 = vsel %vm282, %v948, %v952
      %v955 = vshrl.u32 %v825, 16
      %v957 = vrot.slane %v955, 4
      %v958 = vshll.u32 %v825, 16
      %v960 = vrot.slane %v958, 5
      %v961 = vor.u32 %v957, %v960
      %v962 = vrot.slane %v961, 4
      %v964 = vshll.u32 %v826, 16
      %v966 = vrot.slane %v964, 5
      %v967 = vsel %vm282, %v962, %v966
      %v968 = vshrl.u32 %v826, 16
      %v970 = vrot.slane %v968, 4
      %v971 = vor.u32 %v970, %v966
      %v972 = vrot.slane %v971, 4
      %v974 = vshll.u32 %v827, 16
      %v976 = vrot.slane %v974, 5
      %v977 = vsel %vm282, %v972, %v976
      %v979 = vshrl.u32 %v828, 16
      %v981 = vrot.slane %v979, 4
      %v982 = vshll.u32 %v828, 16
      %v984 = vrot.slane %v982, 5
      %v985 = vor.u32 %v981, %v984
      %v986 = vrot.slane %v985, 4
      %v988 = vshll.u32 %v829, 16
      %v990 = vrot.slane %v988, 5
      %v991 = vsel %vm282, %v986, %v990
      %v992 = vshrl.u32 %v829, 16
      %v994 = vrot.slane %v992, 4
      %v995 = vor.u32 %v994, %v990
      %v996 = vrot.slane %v995, 4
      %v998 = vshll.u32 %v830, 16
      %v1000 = vrot.slane %v998, 5
      %v1001 = vsel %vm282, %v996, %v1000
      %v1003 = vshrl.u32 %v831, 16
      %v1005 = vrot.slane %v1003, 4
      %v1006 = vshll.u32 %v831, 16
      %v1008 = vrot.slane %v1006, 5
      %v1009 = vor.u32 %v1005, %v1008
      %v1010 = vrot.slane %v1009, 4
      %v1012 = vshll.u32 %v832, 16
      %v1014 = vrot.slane %v1012, 5
      %v1015 = vsel %vm282, %v1010, %v1014
      %v1016 = vshrl.u32 %v832, 16
      %v1018 = vrot.slane %v1016, 4
      %v1019 = vor.u32 %v1018, %v1014
      %v1020 = vrot.slane %v1019, 4
      %v1022 = vshll.u32 %v833, 16
      %v1024 = vrot.slane %v1022, 5
      %v1025 = vsel %vm282, %v1020, %v1024
      %1026 = vrot.lane.b32.xlu0 %v847, 16
      %v1027 = vpop.permute.xlu0 %1026
      %1028 = vrot.lane.b32.xlu0 %v857, 16
      %v1029 = vpop.permute.xlu0 %1028
      %1030 = vrot.lane.b32.xlu0 %v871, 16
      %v1031 = vpop.permute.xlu0 %1030
      %1032 = vrot.lane.b32.xlu0 %v881, 16
      %v1033 = vpop.permute.xlu0 %1032
      %1034 = vrot.lane.b32.xlu0 %v895, 16
      %v1035 = vpop.permute.xlu0 %1034
      %1036 = vrot.lane.b32.xlu0 %v905, 16
      %v1037 = vpop.permute.xlu0 %1036
      %1038 = vrot.lane.b32.xlu0 %v919, 16
      %v1039 = vpop.permute.xlu0 %1038
      %1040 = vrot.lane.b32.xlu0 %v929, 16
      %v1041 = vpop.permute.xlu0 %1040
      %1042 = vrot.lane.b32.xlu0 %v943, 16
      %v1043 = vpop.permute.xlu0 %1042
      %1044 = vrot.lane.b32.xlu0 %v953, 16
      %v1045 = vpop.permute.xlu0 %1044
      %1046 = vrot.lane.b32.xlu0 %v967, 16
      %v1047 = vpop.permute.xlu0 %1046
      %1048 = vrot.lane.b32.xlu0 %v977, 16
      %v1049 = vpop.permute.xlu0 %1048
      %1050 = vrot.lane.b32.xlu0 %v991, 16
      %v1051 = vpop.permute.xlu0 %1050
      %1052 = vrot.lane.b32.xlu0 %v1001, 16
      %v1053 = vpop.permute.xlu0 %1052
      %1054 = vrot.lane.b32.xlu0 %v1015, 16
      %v1055 = vpop.permute.xlu0 %1054
      %1056 = vrot.lane.b32.xlu0 %v1025, 16
      %v1057 = vpop.permute.xlu0 %1056
      %vm1074 = vcmask 158848
      %1075 = vst.msk [vmem:[#allocation2] sm:$0xf] %vm1074, %v1027
      %1076 = vst.msk [vmem:[#allocation2 + $0x4] sm:$0xf] %vm1074, %v1029
      %1077 = vst.msk [vmem:[#allocation2 + $0x8] sm:$0xf] %vm1074, %v1031
      %1078 = vst.msk [vmem:[#allocation2 + $0xc] sm:$0xf] %vm1074, %v1033
      %1079 = vst.msk [vmem:[#allocation2 + $0x10] sm:$0xf] %vm1074, %v1035
      %1080 = vst.msk [vmem:[#allocation2 + $0x14] sm:$0xf] %vm1074, %v1037
      %1081 = vst.msk [vmem:[#allocation2 + $0x18] sm:$0xf] %vm1074, %v1039
      %1082 = vst.msk [vmem:[#allocation2 + $0x1c] sm:$0xf] %vm1074, %v1041
      %1083 = vst.msk [vmem:[#allocation2 + $0x20] sm:$0xf] %vm1074, %v1043
      %1084 = vst.msk [vmem:[#allocation2 + $0x24] sm:$0xf] %vm1074, %v1045
      %1085 = vst.msk [vmem:[#allocation2 + $0x28] sm:$0xf] %vm1074, %v1047
      %1086 = vst.msk [vmem:[#allocation2 + $0x2c] sm:$0xf] %vm1074, %v1049
      %1087 = vst.msk [vmem:[#allocation2 + $0x30] sm:$0xf] %vm1074, %v1051
      %1088 = vst.msk [vmem:[#allocation2 + $0x34] sm:$0xf] %vm1074, %v1053
      %1089 = vst.msk [vmem:[#allocation2 + $0x38] sm:$0xf] %vm1074, %v1055
      %1090 = vst.msk [vmem:[#allocation2 + $0x3c] sm:$0xf] %vm1074, %v1057
      %v1091 = vld [vmem:[%s712] sm:$0xe]
      %v1092 = vld [vmem:[%s712 + $0x4] sm:$0xf]
      %v1093 = vld [vmem:[%s712 + $0x8] sm:$0x1]
      %v1094 = vld [vmem:[%s712 + $0xc] sm:$0xe]
      %v1095 = vld [vmem:[%s712 + $0x10] sm:$0xf]
      %v1096 = vld [vmem:[%s712 + $0x14] sm:$0x1]
      %v1097 = vld [vmem:[%s712 + $0x18] sm:$0xe]
      %v1098 = vld [vmem:[%s712 + $0x1c] sm:$0xf]
      %v1099 = vld [vmem:[%s712 + $0x20] sm:$0x1]
      %v1100 = vld [vmem:[%s712 + $0x24] sm:$0xe]
      %v1101 = vld [vmem:[%s712 + $0x28] sm:$0xf]
      %v1102 = vld [vmem:[%s712 + $0x2c] sm:$0x1]
      %v1103 = vld [vmem:[%s712 + $0x30] sm:$0xe]
      %v1104 = vld [vmem:[%s712 + $0x34] sm:$0xf]
      %v1105 = vld [vmem:[%s712 + $0x38] sm:$0x1]
      %v1106 = vld [vmem:[%s712 + $0x3c] sm:$0xe]
      %v1107 = vld [vmem:[%s712 + $0x40] sm:$0xf]
      %v1108 = vld [vmem:[%s712 + $0x44] sm:$0x1]
      %v1109 = vld [vmem:[%s712 + $0x48] sm:$0xe]
      %v1110 = vld [vmem:[%s712 + $0x4c] sm:$0xf]
      %v1111 = vld [vmem:[%s712 + $0x50] sm:$0x1]
      %v1112 = vld [vmem:[%s712 + $0x54] sm:$0xe]
      %v1113 = vld [vmem:[%s712 + $0x58] sm:$0xf]
      %v1114 = vld [vmem:[%s712 + $0x5c] sm:$0x1]
      %v1139 = vrot.slane %v1091, 5
      %v1140 = vrot.slane %v1139, 4
      %v1141 = vrot.slane %v1092, 5
      %v1142 = vsel %vm590, %v1140, %v1141
      %v1143 = vrot.slane %v1141, 4
      %v1144 = vrot.slane %v1093, 5
      %v1145 = vsel %vm590, %v1143, %v1144
      %v1146 = vrot.slane %v1094, 5
      %v1147 = vrot.slane %v1146, 4
      %v1148 = vrot.slane %v1095, 5
      %v1149 = vsel %vm590, %v1147, %v1148
      %v1150 = vrot.slane %v1148, 4
      %v1151 = vrot.slane %v1096, 5
      %v1152 = vsel %vm590, %v1150, %v1151
      %v1153 = vrot.slane %v1097, 5
      %v1154 = vrot.slane %v1153, 4
      %v1155 = vrot.slane %v1098, 5
      %v1156 = vsel %vm590, %v1154, %v1155
      %v1157 = vrot.slane %v1155, 4
      %v1158 = vrot.slane %v1099, 5
      %v1159 = vsel %vm590, %v1157, %v1158
      %v1160 = vrot.slane %v1100, 5
      %v1161 = vrot.slane %v1160, 4
      %v1162 = vrot.slane %v1101, 5
      %v1163 = vsel %vm590, %v1161, %v1162
      %v1164 = vrot.slane %v1162, 4
      %v1165 = vrot.slane %v1102, 5
      %v1166 = vsel %vm590, %v1164, %v1165
      %v1167 = vrot.slane %v1103, 5
      %v1168 = vrot.slane %v1167, 4
      %v1169 = vrot.slane %v1104, 5
      %v1170 = vsel %vm590, %v1168, %v1169
      %v1171 = vrot.slane %v1169, 4
      %v1172 = vrot.slane %v1105, 5
      %v1173 = vsel %vm590, %v1171, %v1172
      %v1174 = vrot.slane %v1106, 5
      %v1175 = vrot.slane %v1174, 4
      %v1176 = vrot.slane %v1107, 5
      %v1177 = vsel %vm590, %v1175, %v1176
      %v1178 = vrot.slane %v1176, 4
      %v1179 = vrot.slane %v1108, 5
      %v1180 = vsel %vm590, %v1178, %v1179
      %v1181 = vrot.slane %v1109, 5
      %v1182 = vrot.slane %v1181, 4
      %v1183 = vrot.slane %v1110, 5
      %v1184 = vsel %vm590, %v1182, %v1183
      %v1185 = vrot.slane %v1183, 4
      %v1186 = vrot.slane %v1111, 5
      %v1187 = vsel %vm590, %v1185, %v1186
      %v1188 = vrot.slane %v1112, 5
      %v1189 = vrot.slane %v1188, 4
      %v1190 = vrot.slane %v1113, 5
      %v1191 = vsel %vm590, %v1189, %v1190
      %v1192 = vrot.slane %v1190, 4
      %v1193 = vrot.slane %v1114, 5
      %v1194 = vsel %vm590, %v1192, %v1193
      %1195 = vrot.lane.b32.xlu0 %v1142, 20
      %v1196 = vpop.permute.xlu0 %1195
      %1197 = vrot.lane.b32.xlu0 %v1145, 20
      %v1198 = vpop.permute.xlu0 %1197
      %1199 = vrot.lane.b32.xlu0 %v1149, 20
      %v1200 = vpop.permute.xlu0 %1199
      %1201 = vrot.lane.b32.xlu0 %v1152, 20
      %v1202 = vpop.permute.xlu0 %1201
      %1203 = vrot.lane.b32.xlu0 %v1156, 20
      %v1204 = vpop.permute.xlu0 %1203
      %1205 = vrot.lane.b32.xlu0 %v1159, 20
      %v1206 = vpop.permute.xlu0 %1205
      %1207 = vrot.lane.b32.xlu0 %v1163, 20
      %v1208 = vpop.permute.xlu0 %1207
      %1209 = vrot.lane.b32.xlu0 %v1166, 20
      %v1210 = vpop.permute.xlu0 %1209
      %1211 = vrot.lane.b32.xlu0 %v1170, 20
      %v1212 = vpop.permute.xlu0 %1211
      %1213 = vrot.lane.b32.xlu0 %v1173, 20
      %v1214 = vpop.permute.xlu0 %1213
      %1215 = vrot.lane.b32.xlu0 %v1177, 20
      %v1216 = vpop.permute.xlu0 %1215
      %1217 = vrot.lane.b32.xlu0 %v1180, 20
      %v1218 = vpop.permute.xlu0 %1217
      %1219 = vrot.lane.b32.xlu0 %v1184, 20
      %v1220 = vpop.permute.xlu0 %1219
      %1221 = vrot.lane.b32.xlu0 %v1187, 20
      %v1222 = vpop.permute.xlu0 %1221
      %1223 = vrot.lane.b32.xlu0 %v1191, 20
      %v1224 = vpop.permute.xlu0 %1223
      %1225 = vrot.lane.b32.xlu0 %v1194, 20
      %v1226 = vpop.permute.xlu0 %1225
      %vm1243 = vcmask 191648
      %1244 = vst.msk [vmem:[#allocation2] sm:$0xf] %vm1243, %v1196
      %1245 = vst.msk [vmem:[#allocation2 + $0x4] sm:$0xf] %vm1243, %v1198
      %1246 = vst.msk [vmem:[#allocation2 + $0x8] sm:$0xf] %vm1243, %v1200
      %1247 = vst.msk [vmem:[#allocation2 + $0xc] sm:$0xf] %vm1243, %v1202
      %1248 = vst.msk [vmem:[#allocation2 + $0x10] sm:$0xf] %vm1243, %v1204
      %1249 = vst.msk [vmem:[#allocation2 + $0x14] sm:$0xf] %vm1243, %v1206
      %1250 = vst.msk [vmem:[#allocation2 + $0x18] sm:$0xf] %vm1243, %v1208
      %1251 = vst.msk [vmem:[#allocation2 + $0x1c] sm:$0xf] %vm1243, %v1210
      %1252 = vst.msk [vmem:[#allocation2 + $0x20] sm:$0xf] %vm1243, %v1212
      %1253 = vst.msk [vmem:[#allocation2 + $0x24] sm:$0xf] %vm1243, %v1214
      %1254 = vst.msk [vmem:[#allocation2 + $0x28] sm:$0xf] %vm1243, %v1216
      %1255 = vst.msk [vmem:[#allocation2 + $0x2c] sm:$0xf] %vm1243, %v1218
      %1256 = vst.msk [vmem:[#allocation2 + $0x30] sm:$0xf] %vm1243, %v1220
      %1257 = vst.msk [vmem:[#allocation2 + $0x34] sm:$0xf] %vm1243, %v1222
      %1258 = vst.msk [vmem:[#allocation2 + $0x38] sm:$0xf] %vm1243, %v1224
      %1259 = vst.msk [vmem:[#allocation2 + $0x3c] sm:$0xf] %vm1243, %v1226
      %s1260 = scalar_lea.vmem %s206, 24
      %v1261 = vld [vmem:[%s1260] sm:$0xf]
      %v1262 = vld [vmem:[%s1260 + $0x4] sm:$0xf]
      %v1263 = vld [vmem:[%s1260 + $0xc] sm:$0xf]
      %v1264 = vld [vmem:[%s1260 + $0x10] sm:$0xf]
      %v1265 = vld [vmem:[%s1260 + $0x18] sm:$0xf]
      %v1266 = vld [vmem:[%s1260 + $0x1c] sm:$0xf]
      %v1267 = vld [vmem:[%s1260 + $0x24] sm:$0xf]
      %v1268 = vld [vmem:[%s1260 + $0x28] sm:$0xf]
      %v1269 = vld [vmem:[%s1260 + $0x30] sm:$0xf]
      %v1270 = vld [vmem:[%s1260 + $0x34] sm:$0xf]
      %v1271 = vld [vmem:[%s1260 + $0x3c] sm:$0xf]
      %v1272 = vld [vmem:[%s1260 + $0x40] sm:$0xf]
      %v1273 = vld [vmem:[%s1260 + $0x48] sm:$0xf]
      %v1274 = vld [vmem:[%s1260 + $0x4c] sm:$0xf]
      %v1275 = vld [vmem:[%s1260 + $0x54] sm:$0xf]
      %v1276 = vld [vmem:[%s1260 + $0x58] sm:$0xf]
      %1293 = vrot.lane.b32.xlu0 %v1261, 24
      %v1294 = vpop.permute.xlu0 %1293
      %1295 = vrot.lane.b32.xlu0 %v1262, 24
      %v1296 = vpop.permute.xlu0 %1295
      %1297 = vrot.lane.b32.xlu0 %v1263, 24
      %v1298 = vpop.permute.xlu0 %1297
      %1299 = vrot.lane.b32.xlu0 %v1264, 24
      %v1300 = vpop.permute.xlu0 %1299
      %1301 = vrot.lane.b32.xlu0 %v1265, 24
      %v1302 = vpop.permute.xlu0 %1301
      %1303 = vrot.lane.b32.xlu0 %v1266, 24
      %v1304 = vpop.permute.xlu0 %1303
      %1305 = vrot.lane.b32.xlu0 %v1267, 24
      %v1306 = vpop.permute.xlu0 %1305
      %1307 = vrot.lane.b32.xlu0 %v1268, 24
      %v1308 = vpop.permute.xlu0 %1307
      %1309 = vrot.lane.b32.xlu0 %v1269, 24
      %v1310 = vpop.permute.xlu0 %1309
      %1311 = vrot.lane.b32.xlu0 %v1270, 24
      %v1312 = vpop.permute.xlu0 %1311
      %1313 = vrot.lane.b32.xlu0 %v1271, 24
      %v1314 = vpop.permute.xlu0 %1313
      %1315 = vrot.lane.b32.xlu0 %v1272, 24
      %v1316 = vpop.permute.xlu0 %1315
      %1317 = vrot.lane.b32.xlu0 %v1273, 24
      %v1318 = vpop.permute.xlu0 %1317
      %1319 = vrot.lane.b32.xlu0 %v1274, 24
      %v1320 = vpop.permute.xlu0 %1319
      %1321 = vrot.lane.b32.xlu0 %v1275, 24
      %v1322 = vpop.permute.xlu0 %1321
      %1323 = vrot.lane.b32.xlu0 %v1276, 24
      %v1324 = vpop.permute.xlu0 %1323
      %vm1341 = vcmask 224448
      %1342 = vst.msk [vmem:[#allocation2] sm:$0xf] %vm1341, %v1294
      %1343 = vst.msk [vmem:[#allocation2 + $0x4] sm:$0xf] %vm1341, %v1296
      %1344 = vst.msk [vmem:[#allocation2 + $0x8] sm:$0xf] %vm1341, %v1298
      %1345 = vst.msk [vmem:[#allocation2 + $0xc] sm:$0xf] %vm1341, %v1300
      %1346 = vst.msk [vmem:[#allocation2 + $0x10] sm:$0xf] %vm1341, %v1302
      %1347 = vst.msk [vmem:[#allocation2 + $0x14] sm:$0xf] %vm1341, %v1304
      %1348 = vst.msk [vmem:[#allocation2 + $0x18] sm:$0xf] %vm1341, %v1306
      %1349 = vst.msk [vmem:[#allocation2 + $0x1c] sm:$0xf] %vm1341, %v1308
      %1350 = vst.msk [vmem:[#allocation2 + $0x20] sm:$0xf] %vm1341, %v1310
      %1351 = vst.msk [vmem:[#allocation2 + $0x24] sm:$0xf] %vm1341, %v1312
      %1352 = vst.msk [vmem:[#allocation2 + $0x28] sm:$0xf] %vm1341, %v1314
      %1353 = vst.msk [vmem:[#allocation2 + $0x2c] sm:$0xf] %vm1341, %v1316
      %1354 = vst.msk [vmem:[#allocation2 + $0x30] sm:$0xf] %vm1341, %v1318
      %1355 = vst.msk [vmem:[#allocation2 + $0x34] sm:$0xf] %vm1341, %v1320
      %1356 = vst.msk [vmem:[#allocation2 + $0x38] sm:$0xf] %vm1341, %v1322
      %1357 = vst.msk [vmem:[#allocation2 + $0x3c] sm:$0xf] %vm1341, %v1324
      %v1358 = vld [vmem:[%s1260] sm:$0xf]
      %v1359 = vld [vmem:[%s1260 + $0x4] sm:$0xf]
      %v1360 = vld [vmem:[%s1260 + $0x8] sm:$0x1]
      %v1361 = vld [vmem:[%s1260 + $0xc] sm:$0xf]
      %v1362 = vld [vmem:[%s1260 + $0x10] sm:$0xf]
      %v1363 = vld [vmem:[%s1260 + $0x14] sm:$0x1]
      %v1364 = vld [vmem:[%s1260 + $0x18] sm:$0xf]
      %v1365 = vld [vmem:[%s1260 + $0x1c] sm:$0xf]
      %v1366 = vld [vmem:[%s1260 + $0x20] sm:$0x1]
      %v1367 = vld [vmem:[%s1260 + $0x24] sm:$0xf]
      %v1368 = vld [vmem:[%s1260 + $0x28] sm:$0xf]
      %v1369 = vld [vmem:[%s1260 + $0x2c] sm:$0x1]
      %v1370 = vld [vmem:[%s1260 + $0x30] sm:$0xf]
      %v1371 = vld [vmem:[%s1260 + $0x34] sm:$0xf]
      %v1372 = vld [vmem:[%s1260 + $0x38] sm:$0x1]
      %v1373 = vld [vmem:[%s1260 + $0x3c] sm:$0xf]
      %v1374 = vld [vmem:[%s1260 + $0x40] sm:$0xf]
      %v1375 = vld [vmem:[%s1260 + $0x44] sm:$0x1]
      %v1376 = vld [vmem:[%s1260 + $0x48] sm:$0xf]
      %v1377 = vld [vmem:[%s1260 + $0x4c] sm:$0xf]
      %v1378 = vld [vmem:[%s1260 + $0x50] sm:$0x1]
      %v1379 = vld [vmem:[%s1260 + $0x54] sm:$0xf]
      %v1380 = vld [vmem:[%s1260 + $0x58] sm:$0xf]
      %v1381 = vld [vmem:[%s1260 + $0x5c] sm:$0x1]
      %v1383 = vshrl.u32 %v1358, 16
      %v1385 = vrot.slane %v1383, 4
      %v1386 = vshll.u32 %v1358, 16
      %v1388 = vrot.slane %v1386, 5
      %v1389 = vor.u32 %v1385, %v1388
      %v1390 = vrot.slane %v1389, 4
      %v1392 = vshll.u32 %v1359, 16
      %v1394 = vrot.slane %v1392, 5
      %v1395 = vsel %vm282, %v1390, %v1394
      %v1396 = vshrl.u32 %v1359, 16
      %v1398 = vrot.slane %v1396, 4
      %v1399 = vor.u32 %v1398, %v1394
      %v1400 = vrot.slane %v1399, 4
      %v1402 = vshll.u32 %v1360, 16
      %v1404 = vrot.slane %v1402, 5
      %v1405 = vsel %vm282, %v1400, %v1404
      %v1407 = vshrl.u32 %v1361, 16
      %v1409 = vrot.slane %v1407, 4
      %v1410 = vshll.u32 %v1361, 16
      %v1412 = vrot.slane %v1410, 5
      %v1413 = vor.u32 %v1409, %v1412
      %v1414 = vrot.slane %v1413, 4
      %v1416 = vshll.u32 %v1362, 16
      %v1418 = vrot.slane %v1416, 5
      %v1419 = vsel %vm282, %v1414, %v1418
      %v1420 = vshrl.u32 %v1362, 16
      %v1422 = vrot.slane %v1420, 4
      %v1423 = vor.u32 %v1422, %v1418
      %v1424 = vrot.slane %v1423, 4
      %v1426 = vshll.u32 %v1363, 16
      %v1428 = vrot.slane %v1426, 5
      %v1429 = vsel %vm282, %v1424, %v1428
      %v1431 = vshrl.u32 %v1364, 16
      %v1433 = vrot.slane %v1431, 4
      %v1434 = vshll.u32 %v1364, 16
      %v1436 = vrot.slane %v1434, 5
      %v1437 = vor.u32 %v1433, %v1436
      %v1438 = vrot.slane %v1437, 4
      %v1440 = vshll.u32 %v1365, 16
      %v1442 = vrot.slane %v1440, 5
      %v1443 = vsel %vm282, %v1438, %v1442
      %v1444 = vshrl.u32 %v1365, 16
      %v1446 = vrot.slane %v1444, 4
      %v1447 = vor.u32 %v1446, %v1442
      %v1448 = vrot.slane %v1447, 4
      %v1450 = vshll.u32 %v1366, 16
      %v1452 = vrot.slane %v1450, 5
      %v1453 = vsel %vm282, %v1448, %v1452
      %v1455 = vshrl.u32 %v1367, 16
      %v1457 = vrot.slane %v1455, 4
      %v1458 = vshll.u32 %v1367, 16
      %v1460 = vrot.slane %v1458, 5
      %v1461 = vor.u32 %v1457, %v1460
      %v1462 = vrot.slane %v1461, 4
      %v1464 = vshll.u32 %v1368, 16
      %v1466 = vrot.slane %v1464, 5
      %v1467 = vsel %vm282, %v1462, %v1466
      %v1468 = vshrl.u32 %v1368, 16
      %v1470 = vrot.slane %v1468, 4
      %v1471 = vor.u32 %v1470, %v1466
      %v1472 = vrot.slane %v1471, 4
      %v1474 = vshll.u32 %v1369, 16
      %v1476 = vrot.slane %v1474, 5
      %v1477 = vsel %vm282, %v1472, %v1476
      %v1479 = vshrl.u32 %v1370, 16
      %v1481 = vrot.slane %v1479, 4
      %v1482 = vshll.u32 %v1370, 16
      %v1484 = vrot.slane %v1482, 5
      %v1485 = vor.u32 %v1481, %v1484
      %v1486 = vrot.slane %v1485, 4
      %v1488 = vshll.u32 %v1371, 16
      %v1490 = vrot.slane %v1488, 5
      %v1491 = vsel %vm282, %v1486, %v1490
      %v1492 = vshrl.u32 %v1371, 16
      %v1494 = vrot.slane %v1492, 4
      %v1495 = vor.u32 %v1494, %v1490
      %v1496 = vrot.slane %v1495, 4
      %v1498 = vshll.u32 %v1372, 16
      %v1500 = vrot.slane %v1498, 5
      %v1501 = vsel %vm282, %v1496, %v1500
      %v1503 = vshrl.u32 %v1373, 16
      %v1505 = vrot.slane %v1503, 4
      %v1506 = vshll.u32 %v1373, 16
      %v1508 = vrot.slane %v1506, 5
      %v1509 = vor.u32 %v1505, %v1508
      %v1510 = vrot.slane %v1509, 4
      %v1512 = vshll.u32 %v1374, 16
      %v1514 = vrot.slane %v1512, 5
      %v1515 = vsel %vm282, %v1510, %v1514
      %v1516 = vshrl.u32 %v1374, 16
      %v1518 = vrot.slane %v1516, 4
      %v1519 = vor.u32 %v1518, %v1514
      %v1520 = vrot.slane %v1519, 4
      %v1522 = vshll.u32 %v1375, 16
      %v1524 = vrot.slane %v1522, 5
      %v1525 = vsel %vm282, %v1520, %v1524
      %v1527 = vshrl.u32 %v1376, 16
      %v1529 = vrot.slane %v1527, 4
      %v1530 = vshll.u32 %v1376, 16
      %v1532 = vrot.slane %v1530, 5
      %v1533 = vor.u32 %v1529, %v1532
      %v1534 = vrot.slane %v1533, 4
      %v1536 = vshll.u32 %v1377, 16
      %v1538 = vrot.slane %v1536, 5
      %v1539 = vsel %vm282, %v1534, %v1538
      %v1540 = vshrl.u32 %v1377, 16
      %v1542 = vrot.slane %v1540, 4
      %v1543 = vor.u32 %v1542, %v1538
      %v1544 = vrot.slane %v1543, 4
      %v1546 = vshll.u32 %v1378, 16
      %v1548 = vrot.slane %v1546, 5
      %v1549 = vsel %vm282, %v1544, %v1548
      %v1551 = vshrl.u32 %v1379, 16
      %v1553 = vrot.slane %v1551, 4
      %v1554 = vshll.u32 %v1379, 16
      %v1556 = vrot.slane %v1554, 5
      %v1557 = vor.u32 %v1553, %v1556
      %v1558 = vrot.slane %v1557, 4
      %v1560 = vshll.u32 %v1380, 16
      %v1562 = vrot.slane %v1560, 5
      %v1563 = vsel %vm282, %v1558, %v1562
      %v1564 = vshrl.u32 %v1380, 16
      %v1566 = vrot.slane %v1564, 4
      %v1567 = vor.u32 %v1566, %v1562
      %v1568 = vrot.slane %v1567, 4
      %v1570 = vshll.u32 %v1381, 16
      %v1572 = vrot.slane %v1570, 5
      %v1573 = vsel %vm282, %v1568, %v1572
      %1574 = vrot.lane.b32.xlu0 %v1395, 28
      %v1575 = vpop.permute.xlu0 %1574
      %1576 = vrot.lane.b32.xlu0 %v1405, 28
      %v1577 = vpop.permute.xlu0 %1576
      %1578 = vrot.lane.b32.xlu0 %v1419, 28
      %v1579 = vpop.permute.xlu0 %1578
      %1580 = vrot.lane.b32.xlu0 %v1429, 28
      %v1581 = vpop.permute.xlu0 %1580
      %1582 = vrot.lane.b32.xlu0 %v1443, 28
      %v1583 = vpop.permute.xlu0 %1582
      %1584 = vrot.lane.b32.xlu0 %v1453, 28
      %v1585 = vpop.permute.xlu0 %1584
      %1586 = vrot.lane.b32.xlu0 %v1467, 28
      %v1587 = vpop.permute.xlu0 %1586
      %1588 = vrot.lane.b32.xlu0 %v1477, 28
      %v1589 = vpop.permute.xlu0 %1588
      %1590 = vrot.lane.b32.xlu0 %v1491, 28
      %v1591 = vpop.permute.xlu0 %1590
      %1592 = vrot.lane.b32.xlu0 %v1501, 28
      %v1593 = vpop.permute.xlu0 %1592
      %1594 = vrot.lane.b32.xlu0 %v1515, 28
      %v1595 = vpop.permute.xlu0 %1594
      %1596 = vrot.lane.b32.xlu0 %v1525, 28
      %v1597 = vpop.permute.xlu0 %1596
      %1598 = vrot.lane.b32.xlu0 %v1539, 28
      %v1599 = vpop.permute.xlu0 %1598
      %1600 = vrot.lane.b32.xlu0 %v1549, 28
      %v1601 = vpop.permute.xlu0 %1600
      %1602 = vrot.lane.b32.xlu0 %v1563, 28
      %v1603 = vpop.permute.xlu0 %1602
      %1604 = vrot.lane.b32.xlu0 %v1573, 28
      %v1605 = vpop.permute.xlu0 %1604
      %vm1622 = vcmask 257248
      %1623 = vst.msk [vmem:[#allocation2] sm:$0xf] %vm1622, %v1575
      %1624 = vst.msk [vmem:[#allocation2 + $0x4] sm:$0xf] %vm1622, %v1577
      %1625 = vst.msk [vmem:[#allocation2 + $0x8] sm:$0xf] %vm1622, %v1579
      %1626 = vst.msk [vmem:[#allocation2 + $0xc] sm:$0xf] %vm1622, %v1581
      %1627 = vst.msk [vmem:[#allocation2 + $0x10] sm:$0xf] %vm1622, %v1583
      %1628 = vst.msk [vmem:[#allocation2 + $0x14] sm:$0xf] %vm1622, %v1585
      %1629 = vst.msk [vmem:[#allocation2 + $0x18] sm:$0xf] %vm1622, %v1587
      %1630 = vst.msk [vmem:[#allocation2 + $0x1c] sm:$0xf] %vm1622, %v1589
      %1631 = vst.msk [vmem:[#allocation2 + $0x20] sm:$0xf] %vm1622, %v1591
      %1632 = vst.msk [vmem:[#allocation2 + $0x24] sm:$0xf] %vm1622, %v1593
      %1633 = vst.msk [vmem:[#allocation2 + $0x28] sm:$0xf] %vm1622, %v1595
      %1634 = vst.msk [vmem:[#allocation2 + $0x2c] sm:$0xf] %vm1622, %v1597
      %1635 = vst.msk [vmem:[#allocation2 + $0x30] sm:$0xf] %vm1622, %v1599
      %1636 = vst.msk [vmem:[#allocation2 + $0x34] sm:$0xf] %vm1622, %v1601
      %1637 = vst.msk [vmem:[#allocation2 + $0x38] sm:$0xf] %vm1622, %v1603
      %1638 = vst.msk [vmem:[#allocation2 + $0x3c] sm:$0xf] %vm1622, %v1605
      %v1639 = vld [vmem:[%s1260] sm:$0xe]
      %v1640 = vld [vmem:[%s1260 + $0x4] sm:$0xf]
      %v1641 = vld [vmem:[%s1260 + $0x8] sm:$0x1]
      %v1642 = vld [vmem:[%s1260 + $0xc] sm:$0xe]
      %v1643 = vld [vmem:[%s1260 + $0x10] sm:$0xf]
      %v1644 = vld [vmem:[%s1260 + $0x14] sm:$0x1]
      %v1645 = vld [vmem:[%s1260 + $0x18] sm:$0xe]
      %v1646 = vld [vmem:[%s1260 + $0x1c] sm:$0xf]
      %v1647 = vld [vmem:[%s1260 + $0x20] sm:$0x1]
      %v1648 = vld [vmem:[%s1260 + $0x24] sm:$0xe]
      %v1649 = vld [vmem:[%s1260 + $0x28] sm:$0xf]
      %v1650 = vld [vmem:[%s1260 + $0x2c] sm:$0x1]
      %v1651 = vld [vmem:[%s1260 + $0x30] sm:$0xe]
      %v1652 = vld [vmem:[%s1260 + $0x34] sm:$0xf]
      %v1653 = vld [vmem:[%s1260 + $0x38] sm:$0x1]
      %v1654 = vld [vmem:[%s1260 + $0x3c] sm:$0xe]
      %v1655 = vld [vmem:[%s1260 + $0x40] sm:$0xf]
      %v1656 = vld [vmem:[%s1260 + $0x44] sm:$0x1]
      %v1657 = vld [vmem:[%s1260 + $0x48] sm:$0xe]
      %v1658 = vld [vmem:[%s1260 + $0x4c] sm:$0xf]
      %v1659 = vld [vmem:[%s1260 + $0x50] sm:$0x1]
      %v1660 = vld [vmem:[%s1260 + $0x54] sm:$0xe]
      %v1661 = vld [vmem:[%s1260 + $0x58] sm:$0xf]
      %v1662 = vld [vmem:[%s1260 + $0x5c] sm:$0x1]
      %v1687 = vrot.slane %v1639, 5
      %v1688 = vrot.slane %v1687, 4
      %v1689 = vrot.slane %v1640, 5
      %v1690 = vsel %vm590, %v1688, %v1689
      %v1691 = vrot.slane %v1689, 4
      %v1692 = vrot.slane %v1641, 5
      %v1693 = vsel %vm590, %v1691, %v1692
      %v1694 = vrot.slane %v1642, 5
      %v1695 = vrot.slane %v1694, 4
      %v1696 = vrot.slane %v1643, 5
      %v1697 = vsel %vm590, %v1695, %v1696
      %v1698 = vrot.slane %v1696, 4
      %v1699 = vrot.slane %v1644, 5
      %v1700 = vsel %vm590, %v1698, %v1699
      %v1701 = vrot.slane %v1645, 5
      %v1702 = vrot.slane %v1701, 4
      %v1703 = vrot.slane %v1646, 5
      %v1704 = vsel %vm590, %v1702, %v1703
      %v1705 = vrot.slane %v1703, 4
      %v1706 = vrot.slane %v1647, 5
      %v1707 = vsel %vm590, %v1705, %v1706
      %v1708 = vrot.slane %v1648, 5
      %v1709 = vrot.slane %v1708, 4
      %v1710 = vrot.slane %v1649, 5
      %v1711 = vsel %vm590, %v1709, %v1710
      %v1712 = vrot.slane %v1710, 4
      %v1713 = vrot.slane %v1650, 5
      %v1714 = vsel %vm590, %v1712, %v1713
      %v1715 = vrot.slane %v1651, 5
      %v1716 = vrot.slane %v1715, 4
      %v1717 = vrot.slane %v1652, 5
      %v1718 = vsel %vm590, %v1716, %v1717
      %v1719 = vrot.slane %v1717, 4
      %v1720 = vrot.slane %v1653, 5
      %v1721 = vsel %vm590, %v1719, %v1720
      %v1722 = vrot.slane %v1654, 5
      %v1723 = vrot.slane %v1722, 4
      %v1724 = vrot.slane %v1655, 5
      %v1725 = vsel %vm590, %v1723, %v1724
      %v1726 = vrot.slane %v1724, 4
      %v1727 = vrot.slane %v1656, 5
      %v1728 = vsel %vm590, %v1726, %v1727
      %v1729 = vrot.slane %v1657, 5
      %v1730 = vrot.slane %v1729, 4
      %v1731 = vrot.slane %v1658, 5
      %v1732 = vsel %vm590, %v1730, %v1731
      %v1733 = vrot.slane %v1731, 4
      %v1734 = vrot.slane %v1659, 5
      %v1735 = vsel %vm590, %v1733, %v1734
      %v1736 = vrot.slane %v1660, 5
      %v1737 = vrot.slane %v1736, 4
      %v1738 = vrot.slane %v1661, 5
      %v1739 = vsel %vm590, %v1737, %v1738
      %v1740 = vrot.slane %v1738, 4
      %v1741 = vrot.slane %v1662, 5
      %v1742 = vsel %vm590, %v1740, %v1741
      %1743 = vrot.lane.b32.xlu0 %v1690, 32
      %v1744 = vpop.permute.xlu0 %1743
      %1745 = vrot.lane.b32.xlu0 %v1693, 32
      %v1746 = vpop.permute.xlu0 %1745
      %1747 = vrot.lane.b32.xlu0 %v1697, 32
      %v1748 = vpop.permute.xlu0 %1747
      %1749 = vrot.lane.b32.xlu0 %v1700, 32
      %v1750 = vpop.permute.xlu0 %1749
      %1751 = vrot.lane.b32.xlu0 %v1704, 32
      %v1752 = vpop.permute.xlu0 %1751
      %1753 = vrot.lane.b32.xlu0 %v1707, 32
      %v1754 = vpop.permute.xlu0 %1753
      %1755 = vrot.lane.b32.xlu0 %v1711, 32
      %v1756 = vpop.permute.xlu0 %1755
      %1757 = vrot.lane.b32.xlu0 %v1714, 32
      %v1758 = vpop.permute.xlu0 %1757
      %1759 = vrot.lane.b32.xlu0 %v1718, 32
      %v1760 = vpop.permute.xlu0 %1759
      %1761 = vrot.lane.b32.xlu0 %v1721, 32
      %v1762 = vpop.permute.xlu0 %1761
      %1763 = vrot.lane.b32.xlu0 %v1725, 32
      %v1764 = vpop.permute.xlu0 %1763
      %1765 = vrot.lane.b32.xlu0 %v1728, 32
      %v1766 = vpop.permute.xlu0 %1765
      %1767 = vrot.lane.b32.xlu0 %v1732, 32
      %v1768 = vpop.permute.xlu0 %1767
      %1769 = vrot.lane.b32.xlu0 %v1735, 32
      %v1770 = vpop.permute.xlu0 %1769
      %1771 = vrot.lane.b32.xlu0 %v1739, 32
      %v1772 = vpop.permute.xlu0 %1771
      %1773 = vrot.lane.b32.xlu0 %v1742, 32
      %v1774 = vpop.permute.xlu0 %1773
      %vm1791 = vcmask 290048
      %1792 = vst.msk [vmem:[#allocation2] sm:$0xf] %vm1791, %v1744
      %1793 = vst.msk [vmem:[#allocation2 + $0x4] sm:$0xf] %vm1791, %v1746
      %1794 = vst.msk [vmem:[#allocation2 + $0x8] sm:$0xf] %vm1791, %v1748
      %1795 = vst.msk [vmem:[#allocation2 + $0xc] sm:$0xf] %vm1791, %v1750
      %1796 = vst.msk [vmem:[#allocation2 + $0x10] sm:$0xf] %vm1791, %v1752
      %1797 = vst.msk [vmem:[#allocation2 + $0x14] sm:$0xf] %vm1791, %v1754
      %1798 = vst.msk [vmem:[#allocation2 + $0x18] sm:$0xf] %vm1791, %v1756
      %1799 = vst.msk [vmem:[#allocation2 + $0x1c] sm:$0xf] %vm1791, %v1758
      %1800 = vst.msk [vmem:[#allocation2 + $0x20] sm:$0xf] %vm1791, %v1760
      %1801 = vst.msk [vmem:[#allocation2 + $0x24] sm:$0xf] %vm1791, %v1762
      %1802 = vst.msk [vmem:[#allocation2 + $0x28] sm:$0xf] %vm1791, %v1764
      %1803 = vst.msk [vmem:[#allocation2 + $0x2c] sm:$0xf] %vm1791, %v1766
      %1804 = vst.msk [vmem:[#allocation2 + $0x30] sm:$0xf] %vm1791, %v1768
      %1805 = vst.msk [vmem:[#allocation2 + $0x34] sm:$0xf] %vm1791, %v1770
      %1806 = vst.msk [vmem:[#allocation2 + $0x38] sm:$0xf] %vm1791, %v1772
      %1807 = vst.msk [vmem:[#allocation2 + $0x3c] sm:$0xf] %vm1791, %v1774
      %v1808 = vld [vmem:[#allocation2] sm:$0xf]
      %v1809 = vld [vmem:[#allocation2 + $0x4] sm:$0xf]
      %v1810 = vld [vmem:[#allocation2 + $0x8] sm:$0xf]
      %v1811 = vld [vmem:[#allocation2 + $0xc] sm:$0xf]
      %v1812 = vld [vmem:[#allocation2 + $0x10] sm:$0xf]
      %v1813 = vld [vmem:[#allocation2 + $0x14] sm:$0xf]
      %v1814 = vld [vmem:[#allocation2 + $0x18] sm:$0xf]
      %v1815 = vld [vmem:[#allocation2 + $0x1c] sm:$0xf]
      %v1816 = vld [vmem:[#allocation2 + $0x20] sm:$0xf]
      %v1817 = vld [vmem:[#allocation2 + $0x24] sm:$0xf]
      %v1818 = vld [vmem:[#allocation2 + $0x28] sm:$0xf]
      %v1819 = vld [vmem:[#allocation2 + $0x2c] sm:$0xf]
      %v1820 = vld [vmem:[#allocation2 + $0x30] sm:$0xf]
      %v1821 = vld [vmem:[#allocation2 + $0x34] sm:$0xf]
      %v1822 = vld [vmem:[#allocation2 + $0x38] sm:$0xf]
      %v1823 = vld [vmem:[#allocation2 + $0x3c] sm:$0xf]
      %v1824 = vld [vmem:[%s210] sm:$0xf]
      %v1825 = vld [vmem:[%s210 + $0x4] sm:$0xf]
      %v1826 = vld [vmem:[%s210 + $0x8] sm:$0xf]
      %v1827 = vld [vmem:[%s210 + $0xc] sm:$0xf]
      %v1828 = vld [vmem:[%s210 + $0x10] sm:$0x3]
      %v1829 = vld [vmem:[%s213] sm:$0x1]
      %v1831 = vperm.slane %v1829, 0
      %v1849 = vunpack.c.l.b16 %v1808
      %v1850 = vunpack.c.l.b16 %v1809
      %v1851 = vunpack.c.l.b16 %v1810
      %v1852 = vunpack.c.l.b16 %v1811
      %v1853 = vunpack.c.l.b16 %v1812
      %v1854 = vunpack.c.l.b16 %v1813
      %v1855 = vunpack.c.l.b16 %v1814
      %v1856 = vunpack.c.l.b16 %v1815
      %v1857 = vunpack.c.l.b16 %v1816
      %v1858 = vunpack.c.l.b16 %v1817
      %v1859 = vunpack.c.l.b16 %v1818
      %v1860 = vunpack.c.l.b16 %v1819
      %v1861 = vunpack.c.l.b16 %v1820
      %v1862 = vunpack.c.l.b16 %v1821
      %v1863 = vunpack.c.l.b16 %v1822
      %v1864 = vunpack.c.l.b16 %v1823
      %v1865 = vpack.c.b16 %v1850, %v1849
      %v1866 = vpack.c.b16 %v1852, %v1851
      %v1867 = vpack.c.b16 %v1854, %v1853
      %v1868 = vpack.c.b16 %v1856, %v1855
      %v1869 = vpack.c.b16 %v1858, %v1857
      %v1870 = vpack.c.b16 %v1860, %v1859
      %v1871 = vpack.c.b16 %v1862, %v1861
      %v1872 = vpack.c.b16 %v1864, %v1863
      %v1878 = vunpack.c.l.b16 %v1824
      %v1879 = vunpack.c.l.b16 %v1825
      %v1880 = vunpack.c.l.b16 %v1826
      %v1881 = vunpack.c.l.b16 %v1827
      %v1882 = vunpack.c.l.b16 %v1828
      %v1883 = vpack.c.b16 %v1879, %v1878
      %v1884 = vpack.c.b16 %v1881, %v1880
      %v1885 = vpack.c.b16 %v1882, %v1882
      %vm1888 = vcmask 293888
      %v1890 = vsel %vm1888, %v1865, 0
      %v1893 = vsel %vm1888, %v1866, 0
      %v1896 = vsel %vm1888, %v1867, 0
      %v1899 = vsel %vm1888, %v1868, 0
      %v1902 = vsel %vm1888, %v1869, 0
      %v1905 = vsel %vm1888, %v1870, 0
      %v1908 = vsel %vm1888, %v1871, 0
      %v1911 = vsel %vm1888, %v1872, 0
      %vm1913 = vcmask 1041408
      %v1915 = vsel %vm1913, %v1885, 0
      %1917 = vmatpush.bf16.msra.mxu0 0
      %1918 = vmatpush.bf16.msra.mxu0 0
      %1919 = vmatpush.bf16.msra.mxu0 0
      %1920 = vmatpush.bf16.msra.mxu0 0
      %1921 = vmatpush.bf16.msra.mxu0 0
      %1922 = vmatpush.bf16.msra.mxu0 %v1915
      %1923 = vmatpush.bf16.msra.mxu0 %v1884
      %1924 = vmatpush.bf16.msra.mxu0 %v1883
      %1925 = vmatmul.bf16.gmra.mxu0 %v1890
      %v1926 = vpop.f32.mrf.mxu0
      %v1927 = vadd.f32 %v1831, %v1926
      %v1928 = vpop.f32.mrf.mxu0
      %v1929 = vadd.f32 %v1831, %v1928
      %1930 = vmatmul.bf16.gmra.mxu0 %v1893
      %v1931 = vpop.f32.mrf.mxu0
      %v1932 = vadd.f32 %v1831, %v1931
      %v1933 = vpop.f32.mrf.mxu0
      %v1934 = vadd.f32 %v1831, %v1933
      %1935 = vmatmul.bf16.gmra.mxu0 %v1896
      %v1936 = vpop.f32.mrf.mxu0
      %v1937 = vadd.f32 %v1831, %v1936
      %v1938 = vpop.f32.mrf.mxu0
      %v1939 = vadd.f32 %v1831, %v1938
      %1940 = vmatmul.bf16.gmra.mxu0 %v1899
      %v1941 = vpop.f32.mrf.mxu0
      %v1942 = vadd.f32 %v1831, %v1941
      %v1943 = vpop.f32.mrf.mxu0
      %v1944 = vadd.f32 %v1831, %v1943
      %1945 = vmatmul.bf16.gmra.mxu0 %v1902
      %v1946 = vpop.f32.mrf.mxu0
      %v1947 = vadd.f32 %v1831, %v1946
      %v1948 = vpop.f32.mrf.mxu0
      %v1949 = vadd.f32 %v1831, %v1948
      %1950 = vmatmul.bf16.gmra.mxu0 %v1905
      %v1951 = vpop.f32.mrf.mxu0
      %v1952 = vadd.f32 %v1831, %v1951
      %v1953 = vpop.f32.mrf.mxu0
      %v1954 = vadd.f32 %v1831, %v1953
      %1955 = vmatmul.bf16.gmra.mxu0 %v1908
      %v1956 = vpop.f32.mrf.mxu0
      %v1957 = vadd.f32 %v1831, %v1956
      %v1958 = vpop.f32.mrf.mxu0
      %v1959 = vadd.f32 %v1831, %v1958
      %1960 = vmatmul.bf16.gmra.mxu0 %v1911
      %v1961 = vpop.f32.mrf.mxu0
      %v1962 = vadd.f32 %v1831, %v1961
      %v1963 = vpop.f32.mrf.mxu0
      %v1964 = vadd.f32 %v1831, %v1963
      %1965 = vdwg.mxu0
      %v1966 = vmax.f32 %v1927, 0.0
      %v1967 = vmax.f32 %v1929, 0.0
      %v1968 = vmax.f32 %v1932, 0.0
      %v1969 = vmax.f32 %v1934, 0.0
      %v1970 = vmax.f32 %v1937, 0.0
      %v1971 = vmax.f32 %v1939, 0.0
      %v1972 = vmax.f32 %v1942, 0.0
      %v1973 = vmax.f32 %v1944, 0.0
      %v1974 = vmax.f32 %v1947, 0.0
      %v1975 = vmax.f32 %v1949, 0.0
      %v1976 = vmax.f32 %v1952, 0.0
      %v1977 = vmax.f32 %v1954, 0.0
      %v1978 = vmax.f32 %v1957, 0.0
      %v1979 = vmax.f32 %v1959, 0.0
      %v1980 = vmax.f32 %v1962, 0.0
      %v1981 = vmax.f32 %v1964, 0.0
      %vm1982 = vcmask 31744
      %1983 = vst.msk [vmem:[%s221] sm:$0xff] %vm1982, %v1966
      %1984 = vst.msk [vmem:[%s221 + $0x8] sm:$0xff] %vm1982, %v1967
      %1985 = vst.msk [vmem:[%s221 + $0x10] sm:$0xff] %vm1982, %v1968
      %1986 = vst.msk [vmem:[%s221 + $0x18] sm:$0xff] %vm1982, %v1969
      %1987 = vst.msk [vmem:[%s221 + $0x20] sm:$0xff] %vm1982, %v1970
      %1988 = vst.msk [vmem:[%s221 + $0x28] sm:$0xff] %vm1982, %v1971
      %1989 = vst.msk [vmem:[%s221 + $0x30] sm:$0xff] %vm1982, %v1972
      %1990 = vst.msk [vmem:[%s221 + $0x38] sm:$0xff] %vm1982, %v1973
      %1991 = vst.msk [vmem:[%s221 + $0x40] sm:$0xff] %vm1982, %v1974
      %1992 = vst.msk [vmem:[%s221 + $0x48] sm:$0xff] %vm1982, %v1975
      %1993 = vst.msk [vmem:[%s221 + $0x50] sm:$0xff] %vm1982, %v1976
      %1994 = vst.msk [vmem:[%s221 + $0x58] sm:$0xff] %vm1982, %v1977
      %1995 = vst.msk [vmem:[%s221 + $0x60] sm:$0xff] %vm1982, %v1978
      %1996 = vst.msk [vmem:[%s221 + $0x68] sm:$0xff] %vm1982, %v1979
      %1997 = vst.msk [vmem:[%s221 + $0x70] sm:$0xff] %vm1982, %v1980
      %1998 = vst.msk [vmem:[%s221 + $0x78] sm:$0xff] %vm1982, %v1981
      %p1999 = scmp.lt.s32.totalorder %s19, 3
      %s2000 = scalar_select %p1999, %s19, 3
      %p2001 = scmp.lt.s32.totalorder %s18, 0
      %s2002 = scalar_select %p2001, %s18, 0
      %s2003 = smul.addr %s2000, 16
      %s2004 = sadd.s32 %s2002, %s2003
      %s2005 = smul.addr %s2004, 8
      %s2006 = scalar_lea.vmem %s3, %s2005
      // Predicated region
      $region33: #{tpu_custom_call.1} parent=31 // pred_check
        %p2007 = pneg %p124
      $region34: #{tpu_custom_call.1} parent=31 // pred_check_branch
        %2009 = sbr.rel (%p2007) target = $region36
      $region35: #{tpu_custom_call.1} parent=31 // pred_region
        _
      $region36: #{tpu_custom_call.1} parent=31 // pred_fallthru
        _
    $region32: #{tpu_custom_call.1} parent=5 // pred_fallthru
      _
    %p2010 = scmp.le.s32.totalorder 2, %s9
    // Predicated region
    $region37: #{tpu_custom_call.1} parent=5 // pred_check
      %p2011 = pneg %p2010
    $region38: #{tpu_custom_call.1} parent=5 // pred_check_branch
      %2013 = sbr.rel (%p2011) target = $region40
    $region39: #{tpu_custom_call.1} parent=5 // pred_region
      %s2014 = ssub.s32 %s9, 2
      // Predicated region
      $region41: #{tpu_custom_call.1} parent=39 // pred_check
        %p2015 = pneg %p130
      $region42: #{tpu_custom_call.1} parent=39 // pred_check_branch
        %2017 = sbr.rel (%p2015) target = $region44
      $region43: #{tpu_custom_call.1} parent=39 // pred_region
        %p2018 = scmp.lt.s32.totalorder %s21, 3
        %s2019 = scalar_select %p2018, %s21, 3
        %p2020 = scmp.lt.s32.totalorder %s20, 0
        %s2021 = scalar_select %p2020, %s20, 0
        %s2022 = smul.addr %s2019, 16
        %s2023 = sadd.s32 %s2021, %s2022
        %s2024 = smul.addr %s2023, 8
        %s2025 = scalar_lea.vmem %s3, %s2024
      $region44: #{tpu_custom_call.1} parent=39 // pred_fallthru
        _
    $region40: #{tpu_custom_call.1} parent=5 // pred_fallthru
      _
  $region6: #{tpu_custom_call.1} parent=0 // loop_footer
    %s13 = sadd.s32 1, %s9
  $region7: #{tpu_custom_call.1} parent=0 // loop_footer_branch
    %8 = sbr.rel target = $region3
  $region8: #{tpu_custom_call.1} parent=0 // loop_exit
    _

</llo_original>
